<compile_context>
chip_gen: v5e
topology: v5e:2x2
jax: 0.10.0
libtpu: 0.0.40
codegen_flags: <defaults>
</compile_context>

<pallas_src>
import functools

import jax
import jax.numpy as jnp
from jax.experimental import pallas as pl
from jax.experimental.pallas import tpu as pltpu

_LANE = 128
_SUBLANE = 8


def _round_up(n, m):
    return ((n + m - 1) // m) * m


def _pad_axis(a, target, axis):
    """Zero-pad `a` along `axis` up to size `target` (no-op if already there)."""
    cur = a.shape[axis]
    if cur == target:
        return a
    widths = [(0, 0)] * a.ndim
    widths[axis] = (0, target - cur)
    return jnp.pad(a, widths)


def _chip_config():
    """Pick (tm, vmem_limit_bytes) per TPU generation."""
    kind = ""
    try:
        kind = jax.devices()[0].device_kind.lower()
    except Exception:
        pass
    vmem_cap = None
    try:
        vmem_cap = int(pltpu.get_tpu_info().vmem_capacity_bytes)
    except Exception:
        pass

    if (vmem_cap is not None and vmem_cap <= 64 * 1024 * 1024) or "v7" in kind:
        # v7x: 64 MiB per TensorCore -> leave headroom for internal scratch.
        tm, limit = 256, 48 * 1024 * 1024
    elif "v5" in kind:
        # v5e: 4x128^2 MXU; oversized row tiles add VMEM pressure, no MXU win.
        tm, limit = 256, 64 * 1024 * 1024
    else:
        # v6e: 128 MiB VMEM; bigger tiles amortize the ~0.35us per-step cost.
        tm, limit = 512, 96 * 1024 * 1024

    if vmem_cap is not None:
        limit = min(limit, max(32 * 1024 * 1024, vmem_cap - 16 * 1024 * 1024))
    return tm, limit


def prepare_ffn_params(w1, b1, w2, b2):
    """One-time weight preparation (call at module init, NOT per forward).

    Pads feature dims to multiples of 128 (lane-dense tiles) and casts the
    matmul operands to bf16; biases stay f32.
    w1: (D, H), b1: (H,), w2: (H, D), b2: (D,)  [in_features, out_features].
    """
    D, H = w1.shape
    Dp, Hp = _round_up(D, _LANE), _round_up(H, _LANE)
    w1p = _pad_axis(_pad_axis(w1, Dp, 0), Hp, 1).astype(jnp.bfloat16)
    w2p = _pad_axis(_pad_axis(w2, Hp, 0), Dp, 1).astype(jnp.bfloat16)
    b1p = _pad_axis(b1.astype(jnp.float32), Hp, 0).reshape(1, Hp)
    b2p = _pad_axis(b2.astype(jnp.float32), Dp, 0).reshape(1, Dp)
    return (w1p, b1p, w2p, b2p, D, H)


def _ffn_kernel(x_ref, w1_ref, b1_ref, w2_ref, b2_ref, o_ref, *, hc):
    # x_ref: (tm, Dp) input dtype    w1_ref: (Dp, Hp) bf16   b1_ref: (1, Hp) f32
    # w2_ref: (Hp, Dp) bf16          b2_ref: (1, Dp)  f32    o_ref: (tm, Dp)
    x = x_ref[...].astype(jnp.bfloat16)          # in-kernel cast (VPU, hidden)
    tm = x_ref.shape[0]
    Hp = w1_ref.shape[1]
    Dp = w2_ref.shape[1]

    acc = jnp.zeros((tm, Dp), jnp.float32)
    # Static (unrolled) loop over hidden chunks bounds the live f32 intermediate
    # to (tm, hc) instead of (tm, Hp); hc is a multiple of 128.
    for c in range(0, Hp, hc):
        cw = min(hc, Hp - c)
        h = jnp.dot(x, w1_ref[:, c:c + cw], preferred_element_type=jnp.float32)
        h = jnp.maximum(h + b1_ref[:, c:c + cw], 0.0)
        acc = acc + jnp.dot(h.astype(jnp.bfloat16), w2_ref[c:c + cw, :],
                            preferred_element_type=jnp.float32)
    o_ref[...] = (acc + b2_ref[...]).astype(o_ref.dtype)


def feed_forward(x, params, *, tm=None, vmem_limit_bytes=None):
    """x: (B, S, D). params: output of prepare_ffn_params (padded bf16 weights)."""
    w1p, b1p, w2p, b2p, D, H = params
    B, S, Dx = x.shape
    assert Dx == D, "x feature dim must match fc1 in_features"
    M = B * S
    Dp, Hp = w1p.shape

    if tm is None or vmem_limit_bytes is None:
        auto_tm, auto_vmem = _chip_config()
        tm = tm if tm is not None else auto_tm
        vmem_limit_bytes = vmem_limit_bytes if vmem_limit_bytes is not None else auto_vmem

    # Row tile: multiple of 8, clamped to the row count; force >= 2 grid steps
    # when possible so the "parallel" row axis can shard across v7x's 2 TCs.
    tm = max(_SUBLANE, _round_up(tm, _SUBLANE))
    tm = min(tm, _round_up(M, _SUBLANE))
    if M >= 2 * _SUBLANE and _round_up(M, tm) // tm < 2:
        tm = _round_up((M + 1) // 2, _SUBLANE)
    Mp = _round_up(M, tm)

    # x stays in its original dtype; pad only when actually needed, so aligned
    # shapes pay zero extra HBM traffic (bf16 cast happens in-kernel).
    x2 = x.reshape(M, D)
    if D != Dp:
        x2 = _pad_axis(x2, Dp, 1)
    if M != Mp:
        x2 = _pad_axis(x2, Mp, 0)

    hc = min(Hp, 1024)  # hidden chunk size (multiple of 128)
    kernel = functools.partial(_ffn_kernel, hc=hc)

    def _call(single_buffer_weights):
        wmode = ({"pipeline_mode": pl.Buffered(1)}
                 if single_buffer_weights else {})
        return pl.pallas_call(
            kernel,
            out_shape=jax.ShapeDtypeStruct((Mp, Dp), x.dtype),
            grid_spec=pltpu.PrefetchScalarGridSpec(
                num_scalar_prefetch=0,
                grid=(Mp // tm,),
                in_specs=[
                    pl.BlockSpec((tm, Dp), lambda i: (i, 0)),           # x rows
                    pl.BlockSpec((Dp, Hp), lambda i: (0, 0), **wmode),  # W1
                    pl.BlockSpec((1, Hp), lambda i: (0, 0), **wmode),   # b1
                    pl.BlockSpec((Hp, Dp), lambda i: (0, 0), **wmode),  # W2
                    pl.BlockSpec((1, Dp), lambda i: (0, 0), **wmode),   # b2
                ],
                out_specs=pl.BlockSpec((tm, Dp), lambda i: (i, 0)),
            ),
            compiler_params=pltpu.CompilerParams(
                dimension_semantics=("parallel",),
                vmem_limit_bytes=vmem_limit_bytes,
            ),
        )(x2, w1p, b1p, w2p, b2p)

    try:
        out = _call(True)    # single-buffer the resident weights/biases
    except Exception:
        out = _call(False)   # fallback: default double-buffering

    return out[:M, :D].reshape(B, S, D)


if __name__ == "__main__":
    # Small shapes consistent with the module (hidden = 4 * embed).
    batch, seq, embed, expansion = 2, 16, 128, 4
    hidden = expansion * embed

    key = jax.random.PRNGKey(0)
    kx, k1, kb1, k2, kb2 = jax.random.split(key, 5)

    x = jax.random.normal(kx, (batch, seq, embed), dtype=jnp.float32)

    # Deterministic init mimicking nn.Linear (uniform in +/- 1/sqrt(fan_in)).
    bound1 = 1.0 / (embed ** 0.5)
    w1 = jax.random.uniform(k1, (embed, hidden), jnp.float32, -bound1, bound1)
    b1 = jax.random.uniform(kb1, (hidden,), jnp.float32, -bound1, bound1)
    bound2 = 1.0 / (hidden ** 0.5)
    w2 = jax.random.uniform(k2, (hidden, embed), jnp.float32, -bound2, bound2)
    b2 = jax.random.uniform(kb2, (embed,), jnp.float32, -bound2, bound2)

    params = prepare_ffn_params(w1, b1, w2, b2)   # one-time weight conversion
    y = jax.block_until_ready(feed_forward(x, params))

    # Reference in plain JAX following the same bf16-operand / f32-accumulate path.
    # TODO(synk): bf16 MXU operands intentionally deviate from fp32 PyTorch parity.
    xb = x.reshape(-1, embed).astype(jnp.bfloat16).astype(jnp.float32)
    w1b = w1.astype(jnp.bfloat16).astype(jnp.float32)
    w2b = w2.astype(jnp.bfloat16).astype(jnp.float32)
    h_ref = jnp.maximum(xb @ w1b + b1, 0.0)
    h_ref = h_ref.astype(jnp.bfloat16).astype(jnp.float32)
    ref = (h_ref @ w2b + b2).reshape(batch, seq, embed)
    assert jnp.allclose(y, ref, atol=2e-2, rtol=2e-2), "mismatch vs reference"

    print("KERNEL_OK")
</pallas_src>

<mosaic_0001>
module attributes {stable_mosaic.version = 11 : i64} {
  func.func @_ffn_kernel(%arg0: i32, %arg1: memref<16x128xf32, #tpu.memory_space<vmem>>, %arg2: memref<128x512xbf16, #tpu.memory_space<vmem>>, %arg3: memref<1x512xf32, #tpu.memory_space<vmem>>, %arg4: memref<512x128xbf16, #tpu.memory_space<vmem>>, %arg5: memref<1x128xf32, #tpu.memory_space<vmem>>, %arg6: memref<16x128xf32, #tpu.memory_space<vmem>>) attributes {dimension_semantics = [#tpu.dimension_semantics<parallel>], iteration_bounds = array<i64: 2>, scalar_prefetch = 0 : i64, scratch_operands = 0 : i64, tpu.core_type = #tpu.core_type<tc>, window_params = [{transform_indices = @transform_0, window_bounds = array<i64: 16, 128>}, {pipeline_mode = #tpu.pipeline_mode<synchronous>, transform_indices = @transform_1, window_bounds = array<i64: 128, 512>}, {pipeline_mode = #tpu.pipeline_mode<synchronous>, transform_indices = @transform_2, window_bounds = array<i64: 1, 512>}, {pipeline_mode = #tpu.pipeline_mode<synchronous>, transform_indices = @transform_3, window_bounds = array<i64: 512, 128>}, {pipeline_mode = #tpu.pipeline_mode<synchronous>, transform_indices = @transform_4, window_bounds = array<i64: 1, 128>}, {transform_indices = @transform_5, window_bounds = array<i64: 16, 128>}]} {
    %c0 = arith.constant 0 : index
    %c0_0 = arith.constant 0 : index
    %0 = vector.load %arg1[%c0, %c0_0] : memref<16x128xf32, #tpu.memory_space<vmem>>, vector<16x128xf32>
    %1 = arith.truncf %0 : vector<16x128xf32> to vector<16x128xbf16>
    %cst = arith.constant 0.000000e+00 : f32
    %2 = vector.broadcast %cst : f32 to vector<16x128xf32>
    %c0_1 = arith.constant 0 : index
    %c0_2 = arith.constant 0 : index
    %3 = vector.load %arg2[%c0_1, %c0_2] : memref<128x512xbf16, #tpu.memory_space<vmem>>, vector<128x512xbf16>
    %cst_3 = arith.constant dense<0.000000e+00> : vector<16x512xf32>
    %4 = tpu.matmul %1, %3, %cst_3 {dimension_numbers = #tpu.dot_dimension_numbers<[1], [0], [0], [1], [0, 0, 1, 1], [], []>} : vector<16x128xbf16>, vector<128x512xbf16>, vector<16x512xf32> -> vector<16x512xf32>
    %c0_4 = arith.constant 0 : index
    %c0_5 = arith.constant 0 : index
    %5 = vector.load %arg3[%c0_4, %c0_5] : memref<1x512xf32, #tpu.memory_space<vmem>>, vector<1x512xf32>
    %6 = vector.broadcast %5 : vector<1x512xf32> to vector<16x512xf32>
    %7 = arith.addf %4, %6 : vector<16x512xf32>
    %cst_6 = arith.constant 0.000000e+00 : f32
    %8 = vector.broadcast %cst_6 : f32 to vector<16x512xf32>
    %9 = arith.maximumf %7, %8 : vector<16x512xf32>
    %10 = arith.truncf %9 : vector<16x512xf32> to vector<16x512xbf16>
    %c0_7 = arith.constant 0 : index
    %c0_8 = arith.constant 0 : index
    %11 = vector.load %arg4[%c0_7, %c0_8] : memref<512x128xbf16, #tpu.memory_space<vmem>>, vector<512x128xbf16>
    %cst_9 = arith.constant dense<0.000000e+00> : vector<16x128xf32>
    %12 = tpu.matmul %10, %11, %cst_9 {dimension_numbers = #tpu.dot_dimension_numbers<[1], [0], [0], [1], [0, 0, 1, 1], [], []>} : vector<16x512xbf16>, vector<512x128xbf16>, vector<16x128xf32> -> vector<16x128xf32>
    %13 = arith.addf %2, %12 : vector<16x128xf32>
    %c0_10 = arith.constant 0 : index
    %c0_11 = arith.constant 0 : index
    %14 = vector.load %arg5[%c0_10, %c0_11] : memref<1x128xf32, #tpu.memory_space<vmem>>, vector<1x128xf32>
    %15 = vector.broadcast %14 : vector<1x128xf32> to vector<16x128xf32>
    %16 = arith.addf %13, %15 : vector<16x128xf32>
    %c0_12 = arith.constant 0 : index
    %c0_13 = arith.constant 0 : index
    %17 = vector.load %arg6[%c0_12, %c0_13] : memref<16x128xf32, #tpu.memory_space<vmem>>, vector<16x128xf32>
    tpu.vector_store %arg6[%c0_12, %c0_13], %16 {strides = array<i32>} : memref<16x128xf32, #tpu.memory_space<vmem>>, vector<16x128xf32>,
    return
  }
  func.func @transform_0(%arg0: i32) -> (i32, i32) {
    %c0_i32 = arith.constant 0 : i32
    %c0_i32_0 = arith.constant 0 : i32
    return %arg0, %c0_i32 : i32, i32
  }
  func.func @transform_1(%arg0: i32) -> (i32, i32) {
    %c0_i32 = arith.constant 0 : i32
    %c0_i32_0 = arith.constant 0 : i32
    %c0_i32_1 = arith.constant 0 : i32
    return %c0_i32, %c0_i32_0 : i32, i32
  }
  func.func @transform_2(%arg0: i32) -> (i32, i32) {
    %c0_i32 = arith.constant 0 : i32
    %c0_i32_0 = arith.constant 0 : i32
    %c0_i32_1 = arith.constant 0 : i32
    return %c0_i32, %c0_i32_0 : i32, i32
  }
  func.func @transform_3(%arg0: i32) -> (i32, i32) {
    %c0_i32 = arith.constant 0 : i32
    %c0_i32_0 = arith.constant 0 : i32
    %c0_i32_1 = arith.constant 0 : i32
    return %c0_i32, %c0_i32_0 : i32, i32
  }
  func.func @transform_4(%arg0: i32) -> (i32, i32) {
    %c0_i32 = arith.constant 0 : i32
    %c0_i32_0 = arith.constant 0 : i32
    %c0_i32_1 = arith.constant 0 : i32
    return %c0_i32, %c0_i32_0 : i32, i32
  }
  func.func @transform_5(%arg0: i32) -> (i32, i32) {
    %c0_i32 = arith.constant 0 : i32
    %c0_i32_0 = arith.constant 0 : i32
    return %arg0, %c0_i32 : i32, i32
  }
}

module attributes {stable_mosaic.version = 11 : i64} {
  func.func @_ffn_kernel(%arg0: i32, %arg1: memref<16x128xf32, #tpu.memory_space<vmem>>, %arg2: memref<128x512xbf16, #tpu.memory_space<vmem>>, %arg3: memref<1x512xf32, #tpu.memory_space<vmem>>, %arg4: memref<512x128xbf16, #tpu.memory_space<vmem>>, %arg5: memref<1x128xf32, #tpu.memory_space<vmem>>, %arg6: memref<16x128xf32, #tpu.memory_space<vmem>>) attributes {dimension_semantics = [#tpu.dimension_semantics<parallel>], iteration_bounds = array<i64: 2>, scalar_prefetch = 0 : i64, scratch_operands = 0 : i64, tpu.core_type = #tpu.core_type<tc>, window_params = [{transform_indices = @transform_0, window_bounds = array<i64: 16, 128>}, {pipeline_mode = #tpu.pipeline_mode<synchronous>, transform_indices = @transform_1, window_bounds = array<i64: 128, 512>}, {pipeline_mode = #tpu.pipeline_mode<synchronous>, transform_indices = @transform_2, window_bounds = array<i64: 1, 512>}, {pipeline_mode = #tpu.pipeline_mode<synchronous>, transform_indices = @transform_3, window_bounds = array<i64: 512, 128>}, {pipeline_mode = #tpu.pipeline_mode<synchronous>, transform_indices = @transform_4, window_bounds = array<i64: 1, 128>}, {transform_indices = @transform_5, window_bounds = array<i64: 16, 128>}]} {
    %c0 = arith.constant 0 : index
    %c0_0 = arith.constant 0 : index
    %0 = vector.load %arg1[%c0, %c0_0] : memref<16x128xf32, #tpu.memory_space<vmem>>, vector<16x128xf32>
    %1 = arith.truncf %0 : vector<16x128xf32> to vector<16x128xbf16>
    %cst = arith.constant 0.000000e+00 : f32
    %2 = vector.broadcast %cst : f32 to vector<16x128xf32>
    %c0_1 = arith.constant 0 : index
    %c0_2 = arith.constant 0 : index
    %3 = vector.load %arg2[%c0_1, %c0_2] : memref<128x512xbf16, #tpu.memory_space<vmem>>, vector<128x512xbf16>
    %cst_3 = arith.constant dense<0.000000e+00> : vector<16x512xf32>
    %4 = tpu.matmul %1, %3, %cst_3 {dimension_numbers = #tpu.dot_dimension_numbers<[1], [0], [0], [1], [0, 0, 1, 1], [], []>} : vector<16x128xbf16>, vector<128x512xbf16>, vector<16x512xf32> -> vector<16x512xf32>
    %c0_4 = arith.constant 0 : index
    %c0_5 = arith.constant 0 : index
    %5 = vector.load %arg3[%c0_4, %c0_5] : memref<1x512xf32, #tpu.memory_space<vmem>>, vector<1x512xf32>
    %6 = vector.broadcast %5 : vector<1x512xf32> to vector<16x512xf32>
    %7 = arith.addf %4, %6 : vector<16x512xf32>
    %cst_6 = arith.constant 0.000000e+00 : f32
    %8 = vector.broadcast %cst_6 : f32 to vector<16x512xf32>
    %9 = arith.maximumf %7, %8 : vector<16x512xf32>
    %10 = arith.truncf %9 : vector<16x512xf32> to vector<16x512xbf16>
    %c0_7 = arith.constant 0 : index
    %c0_8 = arith.constant 0 : index
    %11 = vector.load %arg4[%c0_7, %c0_8] : memref<512x128xbf16, #tpu.memory_space<vmem>>, vector<512x128xbf16>
    %cst_9 = arith.constant dense<0.000000e+00> : vector<16x128xf32>
    %12 = tpu.matmul %10, %11, %cst_9 {dimension_numbers = #tpu.dot_dimension_numbers<[1], [0], [0], [1], [0, 0, 1, 1], [], []>} : vector<16x512xbf16>, vector<512x128xbf16>, vector<16x128xf32> -> vector<16x128xf32>
    %13 = arith.addf %2, %12 : vector<16x128xf32>
    %c0_10 = arith.constant 0 : index
    %c0_11 = arith.constant 0 : index
    %14 = vector.load %arg5[%c0_10, %c0_11] : memref<1x128xf32, #tpu.memory_space<vmem>>, vector<1x128xf32>
    %15 = vector.broadcast %14 : vector<1x128xf32> to vector<16x128xf32>
    %16 = arith.addf %13, %15 : vector<16x128xf32>
    %c0_12 = arith.constant 0 : index
    %c0_13 = arith.constant 0 : index
    %17 = vector.load %arg6[%c0_12, %c0_13] : memref<16x128xf32, #tpu.memory_space<vmem>>, vector<16x128xf32>
    tpu.vector_store %arg6[%c0_12, %c0_13], %16 {strides = array<i32>} : memref<16x128xf32, #tpu.memory_space<vmem>>, vector<16x128xf32>,
    return
  }
  func.func @transform_0(%arg0: i32) -> (i32, i32) {
    %c0_i32 = arith.constant 0 : i32
    %c0_i32_0 = arith.constant 0 : i32
    return %arg0, %c0_i32 : i32, i32
  }
  func.func @transform_1(%arg0: i32) -> (i32, i32) {
    %c0_i32 = arith.constant 0 : i32
    %c0_i32_0 = arith.constant 0 : i32
    %c0_i32_1 = arith.constant 0 : i32
    return %c0_i32, %c0_i32_0 : i32, i32
  }
  func.func @transform_2(%arg0: i32) -> (i32, i32) {
    %c0_i32 = arith.constant 0 : i32
    %c0_i32_0 = arith.constant 0 : i32
    %c0_i32_1 = arith.constant 0 : i32
    return %c0_i32, %c0_i32_0 : i32, i32
  }
  func.func @transform_3(%arg0: i32) -> (i32, i32) {
    %c0_i32 = arith.constant 0 : i32
    %c0_i32_0 = arith.constant 0 : i32
    %c0_i32_1 = arith.constant 0 : i32
    return %c0_i32, %c0_i32_0 : i32, i32
  }
  func.func @transform_4(%arg0: i32) -> (i32, i32) {
    %c0_i32 = arith.constant 0 : i32
    %c0_i32_0 = arith.constant 0 : i32
    %c0_i32_1 = arith.constant 0 : i32
    return %c0_i32, %c0_i32_0 : i32, i32
  }
  func.func @transform_5(%arg0: i32) -> (i32, i32) {
    %c0_i32 = arith.constant 0 : i32
    %c0_i32_0 = arith.constant 0 : i32
    return %arg0, %c0_i32 : i32, i32
  }
}

</mosaic_0001>

<llo_original>
// kernel: tpu_custom_call.1
$region0: #{tpu_custom_call.1}
  #allocation0 [shape = 'u32[]', space=smem, size = 0x4, offset = 0x4, fixed_abs, tag = 'smem constant byte address 0x4 - core index']
  #allocation1 [shape = 'u32[72,128]{1,0:T(1,128)}', space=vmem, size = 0x9000, scoped, tag = 'internal scratch']
  %s0 = inlined_call_operand.hbm [shape: f32[32,128], index: 0, kind: input, shape index: {}]
  %s1 = inlined_call_operand.hbm [shape: bf16[128,512], index: 1, kind: input, shape index: {}]
  %s2 = inlined_call_operand.hbm [shape: f32[1,512], index: 2, kind: input, shape index: {}]
  %s3 = inlined_call_operand.hbm [shape: bf16[512,128], index: 3, kind: input, shape index: {}]
  %s4 = inlined_call_operand.vmem [shape: f32[1,128], index: 4, kind: input, shape index: {}]
  %s5 = inlined_call_operand.hbm [shape: f32[32,128], index: 5, kind: output, shape index: {}]
  %s6 = sld [smem:[#allocation0]]
  $region69: #{tpu_custom_call.1} parent=0
    _
  %s8 = ssub.s32 1, %s6
  %s9 = scalar_select 0, %s8, %s6
  $region1: #{tpu_custom_call.1} parent=0
    #allocation2 [shape = 'u8[16384]{0}', space=vmem, size = 0x4000, scoped, tag = 'input window, operand 0']
    #allocation3 [shape = 's32[2]{0}', space=sflag, size = 0x8, scoped, tag = 'scoped memory for tpu_custom_call.1']
    #allocation4 [shape = 's32[2]{0}', space=sflag, size = 0x8, scoped, tag = 'scoped memory for tpu_custom_call.1']
    #allocation5 [shape = 'u8[131072]{0}', space=vmem, size = 0x20000, scoped, tag = 'input window, operand 1, single buffered']
    #allocation6 [shape = 's32[1]{0}', space=sflag, size = 0x4, scoped, tag = 'scoped memory for tpu_custom_call.1']
    #allocation7 [shape = 'u8[2048]{0}', space=vmem, size = 0x800, scoped, tag = 'input window, operand 2, single buffered']
    #allocation8 [shape = 'u8[131072]{0}', space=vmem, size = 0x20000, scoped, tag = 'input window, operand 3, single buffered']
    #allocation9 [shape = 's32[1]{0}', space=sflag, size = 0x4, scoped, tag = 'scoped memory for tpu_custom_call.1']
    #allocation10 [shape = 'u8[16384]{0}', space=vmem, size = 0x4000, scoped, tag = 'output window, operand 0']
    %10 = vsyncpa [#allocation3], 0
    %s11 = scalar_lea.sflag [#allocation3], 1
    %12 = vsyncpa %s11, 0
    %13 = vsyncpa [#allocation6], 0
    %14 = vsyncpa [#allocation9], 0
    %15 = vsyncpa [#allocation4], 0
    %s16 = scalar_lea.sflag [#allocation4], 1
    %17 = vsyncpa %s16, 0
    loop: start=0, step=1, limit=4
    $region2: #{tpu_custom_call.1} parent=1 // loop_pre_header
      _
    $region3: #{tpu_custom_call.1} parent=1 // loop_header
      %s19 = sphi 0, %s23
      %p20 = scmp.ge.s32.totalorder %s19, 4
      %s29 = sphi 0, %s31
      %s32 = sphi 0, %s29
      %s33 = sphi 0, %s32
      %s49 = sphi 0, %s33
      %s53 = sphi 0, %s53
      %s55 = sphi 0, %s53
      %s56 = sphi 0, %s55
      %s70 = sphi 0, %s56
      %s74 = sphi 0, %s74
      %s76 = sphi 0, %s74
      %s77 = sphi 0, %s76
      %s91 = sphi 0, %s77
      %s95 = sphi 0, %s95
      %s97 = sphi 0, %s95
      %s98 = sphi 0, %s97
      %s112 = sphi 0, %s98
      %s116 = sphi 0, %s116
      %s118 = sphi 0, %s116
      %s119 = sphi 0, %s118
      %s133 = sphi 0, %s119
      %s139 = sphi 0, %s141
      %s142 = sphi 0, %s139
      %s143 = sphi 0, %s142
      %s159 = sphi 0, %s143
    $region4: #{tpu_custom_call.1} parent=1 // loop_header_branch
      %22 = sbr.rel (%p20) target = $region8
    $region5: #{tpu_custom_call.1} parent=1 // loop_body
      %s24 = ssub.s32 %s19, 1
      %s25 = ssub.s32 %s19, 2
      %s26 = sadd.s32 %s19, 1
      %s27 = ssub.s32 %s19, %s26
      %p28 = scmp.eq.s32.totalorder %s27, 0
      %s30 = sadd.s32 %s29, 1
      %s31 = scalar_select %p28, %s29, %s30
      %p34 = pneg %p28
      %p35 = scmp.eq.s32.totalorder %s19, 1
      %p36 = por %p34, %p35
      %p37 = scmp.ne.s32.totalorder %s29, %s32
      %p38 = scmp.eq.s32.totalorder %s19, 0
      %p39 = por %p37, %p38
      %p40 = scmp.ne.s32.totalorder %s29, %s32
      %p41 = scmp.eq.s32.totalorder %s24, 1
      %p42 = por %p40, %p41
      %p43 = scmp.ne.s32.totalorder %s32, %s33
      %p44 = scmp.eq.s32.totalorder %s24, 0
      %p45 = por %p43, %p44
      %p46 = scmp.ne.s32.totalorder %s32, %s33
      %p47 = scmp.eq.s32.totalorder %s25, 1
      %p48 = por %p46, %p47
      %p50 = scmp.ne.s32.totalorder %s33, %s49
      %p51 = scmp.eq.s32.totalorder %s25, 0
      %p52 = por %p50, %p51
      %s54 = sadd.s32 %s53, 1
      %p57 = scmp.eq.s32.totalorder %s19, 1
      %p58 = scmp.ne.s32.totalorder %s53, %s55
      %p59 = scmp.eq.s32.totalorder %s19, 0
      %p60 = por %p58, %p59
      %p61 = scmp.ne.s32.totalorder %s53, %s55
      %p62 = scmp.eq.s32.totalorder %s24, 1
      %p63 = por %p61, %p62
      %p64 = scmp.ne.s32.totalorder %s55, %s56
      %p65 = scmp.eq.s32.totalorder %s24, 0
      %p66 = por %p64, %p65
      %p67 = scmp.ne.s32.totalorder %s55, %s56
      %p68 = scmp.eq.s32.totalorder %s25, 1
      %p69 = por %p67, %p68
      %p71 = scmp.ne.s32.totalorder %s56, %s70
      %p72 = scmp.eq.s32.totalorder %s25, 0
      %p73 = por %p71, %p72
      %s75 = sadd.s32 %s74, 1
      %p78 = scmp.eq.s32.totalorder %s19, 1
      %p79 = scmp.ne.s32.totalorder %s74, %s76
      %p80 = scmp.eq.s32.totalorder %s19, 0
      %p81 = por %p79, %p80
      %p82 = scmp.ne.s32.totalorder %s74, %s76
      %p83 = scmp.eq.s32.totalorder %s24, 1
      %p84 = por %p82, %p83
      %p85 = scmp.ne.s32.totalorder %s76, %s77
      %p86 = scmp.eq.s32.totalorder %s24, 0
      %p87 = por %p85, %p86
      %p88 = scmp.ne.s32.totalorder %s76, %s77
      %p89 = scmp.eq.s32.totalorder %s25, 1
      %p90 = por %p88, %p89
      %p92 = scmp.ne.s32.totalorder %s77, %s91
      %p93 = scmp.eq.s32.totalorder %s25, 0
      %p94 = por %p92, %p93
      %s96 = sadd.s32 %s95, 1
      %p99 = scmp.eq.s32.totalorder %s19, 1
      %p100 = scmp.ne.s32.totalorder %s95, %s97
      %p101 = scmp.eq.s32.totalorder %s19, 0
      %p102 = por %p100, %p101
      %p103 = scmp.ne.s32.totalorder %s95, %s97
      %p104 = scmp.eq.s32.totalorder %s24, 1
      %p105 = por %p103, %p104
      %p106 = scmp.ne.s32.totalorder %s97, %s98
      %p107 = scmp.eq.s32.totalorder %s24, 0
      %p108 = por %p106, %p107
      %p109 = scmp.ne.s32.totalorder %s97, %s98
      %p110 = scmp.eq.s32.totalorder %s25, 1
      %p111 = por %p109, %p110
      %p113 = scmp.ne.s32.totalorder %s98, %s112
      %p114 = scmp.eq.s32.totalorder %s25, 0
      %p115 = por %p113, %p114
      %s117 = sadd.s32 %s116, 1
      %p120 = scmp.eq.s32.totalorder %s19, 1
      %p121 = scmp.ne.s32.totalorder %s116, %s118
      %p122 = scmp.eq.s32.totalorder %s19, 0
      %p123 = por %p121, %p122
      %p124 = scmp.ne.s32.totalorder %s116, %s118
      %p125 = scmp.eq.s32.totalorder %s24, 1
      %p126 = por %p124, %p125
      %p127 = scmp.ne.s32.totalorder %s118, %s119
      %p128 = scmp.eq.s32.totalorder %s24, 0
      %p129 = por %p127, %p128
      %p130 = scmp.ne.s32.totalorder %s118, %s119
      %p131 = scmp.eq.s32.totalorder %s25, 1
      %p132 = por %p130, %p131
      %p134 = scmp.ne.s32.totalorder %s119, %s133
      %p135 = scmp.eq.s32.totalorder %s25, 0
      %p136 = por %p134, %p135
      %s137 = ssub.s32 %s19, %s26
      %p138 = scmp.eq.s32.totalorder %s137, 0
      %s140 = sadd.s32 %s139, 1
      %s141 = scalar_select %p138, %s139, %s140
      %p144 = pneg %p138
      %p145 = scmp.eq.s32.totalorder %s19, 1
      %p146 = por %p144, %p145
      %p147 = scmp.ne.s32.totalorder %s139, %s142
      %p148 = scmp.eq.s32.totalorder %s19, 0
      %p149 = por %p147, %p148
      %p150 = scmp.ne.s32.totalorder %s139, %s142
      %p151 = scmp.eq.s32.totalorder %s24, 1
      %p152 = por %p150, %p151
      %p153 = scmp.ne.s32.totalorder %s142, %s143
      %p154 = scmp.eq.s32.totalorder %s24, 0
      %p155 = por %p153, %p154
      %p156 = scmp.ne.s32.totalorder %s142, %s143
      %p157 = scmp.eq.s32.totalorder %s25, 1
      %p158 = por %p156, %p157
      %p160 = scmp.ne.s32.totalorder %s143, %s159
      %p161 = scmp.eq.s32.totalorder %s25, 0
      %p162 = por %p160, %p161
      %p163 = scmp.le.s32.totalorder 1, %s19
      %p164 = scmp.lt.s32.totalorder %s19, 3
      %p165 = pnand %p163, %p164
      %p166 = pneg %p165
      // Predicated region
      $region9: #{tpu_custom_call.1} parent=5 // pred_check
        _
      $region10: #{tpu_custom_call.1} parent=5 // pred_check_branch
        %168 = sbr.rel (%p165) target = $region12
      $region11: #{tpu_custom_call.1} parent=5 // pred_region
        %s169 = ssub.s32 %s19, 1
        // Predicated region
        $region13: #{tpu_custom_call.1} parent=11 // pred_check
          %p170 = pneg %p66
        $region14: #{tpu_custom_call.1} parent=11 // pred_check_branch
          %172 = sbr.rel (%p170) target = $region16
        $region15: #{tpu_custom_call.1} parent=11 // pred_region
          %174 = vsyncadd [#allocation6], 0
          %s175 = sshll.u32 %s1, 4
          %s176 = int_to_ptr.hbm [resolvable:$true] %s175
          %s177 = sshll.u32 [#allocation5], 4
          %s178 = int_to_ptr.vmem [resolvable:$true] %s177
          %183 = dma.hbm_to_vmem [thread:$0]  %s176, 4096, %s178, [#allocation6], 256, 256, 16
        $region16: #{tpu_custom_call.1} parent=11 // pred_fallthru
          _
        // Predicated region
        $region17: #{tpu_custom_call.1} parent=11 // pred_check
          %p184 = pneg %p87
        $region18: #{tpu_custom_call.1} parent=11 // pred_check_branch
          %186 = sbr.rel (%p184) target = $region20
        $region19: #{tpu_custom_call.1} parent=11 // pred_region
          %188 = vsyncadd [#allocation6], 0
          %s190 = sshll.u32 %s2, 4
          %s191 = int_to_ptr.hbm [resolvable:$true] %s190
          %s192 = sshll.u32 [#allocation7], 4
          %s193 = int_to_ptr.vmem [resolvable:$true] %s192
          %195 = dma.hbm_to_vmem [thread:$0]  %s191, 64, %s193, [#allocation6]
        $region20: #{tpu_custom_call.1} parent=11 // pred_fallthru
          _
        // Predicated region
        $region21: #{tpu_custom_call.1} parent=11 // pred_check
          %p196 = pneg %p108
        $region22: #{tpu_custom_call.1} parent=11 // pred_check_branch
          %198 = sbr.rel (%p196) target = $region24
        $region23: #{tpu_custom_call.1} parent=11 // pred_region
          %200 = vsyncadd [#allocation9], 0
          %s201 = sshll.u32 %s3, 4
          %s202 = int_to_ptr.hbm [resolvable:$true] %s201
          %s203 = sshll.u32 [#allocation8], 4
          %s204 = int_to_ptr.vmem [resolvable:$true] %s203
          %209 = dma.hbm_to_vmem [thread:$0]  %s202, 4096, %s204, [#allocation9], 64, 64, 4
        $region24: #{tpu_custom_call.1} parent=11 // pred_fallthru
          _
        // Predicated region
        $region25: #{tpu_custom_call.1} parent=11 // pred_check
          %p210 = pneg %p129
        $region26: #{tpu_custom_call.1} parent=11 // pred_check_branch
          %212 = sbr.rel (%p210) target = $region28
        $region27: #{tpu_custom_call.1} parent=11 // pred_region
          _
        $region28: #{tpu_custom_call.1} parent=11 // pred_fallthru
          _
      $region12: #{tpu_custom_call.1} parent=5 // pred_fallthru
        _
      %p213 = scmp.lt.s32.totalorder %s19, 2
      // Predicated region
      $region29: #{tpu_custom_call.1} parent=5 // pred_check
        %p214 = pneg %p213
      $region30: #{tpu_custom_call.1} parent=5 // pred_check_branch
        %216 = sbr.rel (%p214) target = $region32
      $region31: #{tpu_custom_call.1} parent=5 // pred_region
        // Predicated region
        $region33: #{tpu_custom_call.1} parent=31 // pred_check
          %p217 = pneg %p39
        $region34: #{tpu_custom_call.1} parent=31 // pred_check_branch
          %219 = sbr.rel (%p217) target = $region36
        $region35: #{tpu_custom_call.1} parent=31 // pred_region
          %s220 = sand.u32 %s29, 1
          %s221 = scalar_lea.sflag [#allocation3], %s220
          %s222 = sand.u32 %s29, 1
          %s223 = smul.addr %s222, 16
          %s224 = scalar_lea.vmem [#allocation2], %s223
          %s225 = smul.u32 2, %s19
          %227 = vsyncadd %s221, 0
          %s228 = smul.addr %s225, 8
          %s229 = scalar_lea.hbm %s0, %s228
          %s230 = sshll.u32 %s229, 4
          %s231 = int_to_ptr.hbm [resolvable:$true] %s230
          %s232 = sshll.u32 %s224, 4
          %s233 = int_to_ptr.vmem [resolvable:$true] %s232
          %238 = dma.hbm_to_vmem [thread:$0]  %s231, 256, %s233, %s221, 128, 128, 8
        $region36: #{tpu_custom_call.1} parent=31 // pred_fallthru
          _
      $region32: #{tpu_custom_call.1} parent=5 // pred_fallthru
        _
      %p239 = scmp.le.s32.totalorder 1, %s19
      %p240 = scmp.lt.s32.totalorder %s19, 3
      %p241 = pnand %p239, %p240
      %p242 = pneg %p241
      // Predicated region
      $region37: #{tpu_custom_call.1} parent=5 // pred_check
        _
      $region38: #{tpu_custom_call.1} parent=5 // pred_check_branch
        %244 = sbr.rel (%p241) target = $region40
      $region39: #{tpu_custom_call.1} parent=5 // pred_region
        %s245 = ssub.s32 %s19, 1
        %s246 = sand.u32 %s32, 1
        %s247 = scalar_lea.sflag [#allocation3], %s246
        %s248 = sand.u32 %s32, 1
        %s249 = smul.addr %s248, 16
        %s250 = scalar_lea.vmem [#allocation2], %s249
        // Predicated region
        $region41: #{tpu_custom_call.1} parent=39 // pred_check
          %p251 = pneg %p45
        $region42: #{tpu_custom_call.1} parent=39 // pred_check_branch
          %253 = sbr.rel (%p251) target = $region44
        $region43: #{tpu_custom_call.1} parent=39 // pred_region
          %255 = dma.done %s247, 256
        $region44: #{tpu_custom_call.1} parent=39 // pred_fallthru
          _
        // Predicated region
        $region45: #{tpu_custom_call.1} parent=39 // pred_check
          %p256 = pneg %p66
        $region46: #{tpu_custom_call.1} parent=39 // pred_check_branch
          %258 = sbr.rel (%p256) target = $region48
        $region47: #{tpu_custom_call.1} parent=39 // pred_region
          %260 = dma.done [#allocation6], 4096
        $region48: #{tpu_custom_call.1} parent=39 // pred_fallthru
          _
        // Predicated region
        $region49: #{tpu_custom_call.1} parent=39 // pred_check
          %p261 = pneg %p87
        $region50: #{tpu_custom_call.1} parent=39 // pred_check_branch
          %263 = sbr.rel (%p261) target = $region52
        $region51: #{tpu_custom_call.1} parent=39 // pred_region
          %265 = dma.done [#allocation6], 64
        $region52: #{tpu_custom_call.1} parent=39 // pred_fallthru
          _
        // Predicated region
        $region53: #{tpu_custom_call.1} parent=39 // pred_check
          %p266 = pneg %p108
        $region54: #{tpu_custom_call.1} parent=39 // pred_check_branch
          %268 = sbr.rel (%p266) target = $region56
        $region55: #{tpu_custom_call.1} parent=39 // pred_region
          %270 = dma.done [#allocation9], 4096
        $region56: #{tpu_custom_call.1} parent=39 // pred_fallthru
          _
        %s271 = sand.u32 %s32, 1
        %s272 = scalar_lea.sflag [#allocation3], %s271
        %s273 = sand.u32 %s32, 1
        %s274 = smul.addr %s273, 16
        %s275 = scalar_lea.vmem [#allocation2], %s274
        %p276 = pneg %p45
        %p277 = pneg %p42
        %p278 = pneg %p66
        %p279 = pneg %p63
        %p280 = pneg %p87
        %p281 = pneg %p84
        %p282 = pneg %p108
        %p283 = pneg %p105
        %p284 = pneg %p129
        %p285 = pneg %p126
        %p286 = pneg %p155
        %p287 = pneg %p152
        %s288 = sand.u32 %s142, 1
        %s289 = scalar_lea.sflag [#allocation4], %s288
        %s290 = sand.u32 %s142, 1
        %s291 = smul.addr %s290, 16
        %s292 = scalar_lea.vmem [#allocation10], %s291
        %s293 = smul.u32 2, %s24
        %s294 = smul.u32 2, %s24
        %v295 = vld [vmem:[%s250] sm:$0xff]
        %v296 = vld [vmem:[%s250 + $0x8] sm:$0xff]
        %v297 = vpack.c.bf16 %v296, %v295
        %v298 = vld [vmem:[#allocation5] sm:$0xff]
        %v299 = vld [vmem:[#allocation5 + $0x8] sm:$0xff]
        %v300 = vld [vmem:[#allocation5 + $0x10] sm:$0xff]
        %v301 = vld [vmem:[#allocation5 + $0x18] sm:$0xff]
        %v302 = vld [vmem:[#allocation5 + $0x20] sm:$0xff]
        %v303 = vld [vmem:[#allocation5 + $0x28] sm:$0xff]
        %v304 = vld [vmem:[#allocation5 + $0x30] sm:$0xff]
        %v305 = vld [vmem:[#allocation5 + $0x38] sm:$0xff]
        %v306 = vld [vmem:[#allocation5 + $0x40] sm:$0xff]
        %v307 = vld [vmem:[#allocation5 + $0x48] sm:$0xff]
        %v308 = vld [vmem:[#allocation5 + $0x50] sm:$0xff]
        %v309 = vld [vmem:[#allocation5 + $0x58] sm:$0xff]
        %v310 = vld [vmem:[#allocation5 + $0x60] sm:$0xff]
        %v311 = vld [vmem:[#allocation5 + $0x68] sm:$0xff]
        %v312 = vld [vmem:[#allocation5 + $0x70] sm:$0xff]
        %v313 = vld [vmem:[#allocation5 + $0x78] sm:$0xff]
        %v314 = vld [vmem:[#allocation5 + $0x80] sm:$0xff]
        %v315 = vld [vmem:[#allocation5 + $0x88] sm:$0xff]
        %v316 = vld [vmem:[#allocation5 + $0x90] sm:$0xff]
        %v317 = vld [vmem:[#allocation5 + $0x98] sm:$0xff]
        %v318 = vld [vmem:[#allocation5 + $0xa0] sm:$0xff]
        %v319 = vld [vmem:[#allocation5 + $0xa8] sm:$0xff]
        %v320 = vld [vmem:[#allocation5 + $0xb0] sm:$0xff]
        %v321 = vld [vmem:[#allocation5 + $0xb8] sm:$0xff]
        %v322 = vld [vmem:[#allocation5 + $0xc0] sm:$0xff]
        %v323 = vld [vmem:[#allocation5 + $0xc8] sm:$0xff]
        %v324 = vld [vmem:[#allocation5 + $0xd0] sm:$0xff]
        %v325 = vld [vmem:[#allocation5 + $0xd8] sm:$0xff]
        %v326 = vld [vmem:[#allocation5 + $0xe0] sm:$0xff]
        %v327 = vld [vmem:[#allocation5 + $0xe8] sm:$0xff]
        %v328 = vld [vmem:[#allocation5 + $0xf0] sm:$0xff]
        %v329 = vld [vmem:[#allocation5 + $0xf8] sm:$0xff]
        %v330 = vld [vmem:[#allocation7] sm:$0xf]
        %v332 = vperm.slane %v330, 0
        %v333 = vperm.slane %v330, 1
        %v334 = vperm.slane %v330, 2
        %v335 = vperm.slane %v330, 3
        %v372 = vunpack.c.l.b16 %v298
        %v373 = vunpack.c.h.b16 %v298
        %v374 = vunpack.c.l.b16 %v299
        %v375 = vunpack.c.h.b16 %v299
        %v376 = vunpack.c.l.b16 %v300
        %v377 = vunpack.c.h.b16 %v300
        %v378 = vunpack.c.l.b16 %v301
        %v379 = vunpack.c.h.b16 %v301
        %v380 = vunpack.c.l.b16 %v302
        %v381 = vunpack.c.h.b16 %v302
        %v382 = vunpack.c.l.b16 %v303
        %v383 = vunpack.c.h.b16 %v303
        %v384 = vunpack.c.l.b16 %v304
        %v385 = vunpack.c.h.b16 %v304
        %v386 = vunpack.c.l.b16 %v305
        %v387 = vunpack.c.h.b16 %v305
        %v388 = vunpack.c.l.b16 %v306
        %v389 = vunpack.c.h.b16 %v306
        %v390 = vunpack.c.l.b16 %v307
        %v391 = vunpack.c.h.b16 %v307
        %v392 = vunpack.c.l.b16 %v308
        %v393 = vunpack.c.h.b16 %v308
        %v394 = vunpack.c.l.b16 %v309
        %v395 = vunpack.c.h.b16 %v309
        %v396 = vunpack.c.l.b16 %v310
        %v397 = vunpack.c.h.b16 %v310
        %v398 = vunpack.c.l.b16 %v311
        %v399 = vunpack.c.h.b16 %v311
        %v400 = vunpack.c.l.b16 %v312
        %v401 = vunpack.c.h.b16 %v312
        %v402 = vunpack.c.l.b16 %v313
        %v403 = vunpack.c.h.b16 %v313
        %v404 = vunpack.c.l.b16 %v314
        %v405 = vunpack.c.h.b16 %v314
        %v406 = vunpack.c.l.b16 %v315
        %v407 = vunpack.c.h.b16 %v315
        %v408 = vunpack.c.l.b16 %v316
        %v409 = vunpack.c.h.b16 %v316
        %v410 = vunpack.c.l.b16 %v317
        %v411 = vunpack.c.h.b16 %v317
        %v412 = vunpack.c.l.b16 %v318
        %v413 = vunpack.c.h.b16 %v318
        %v414 = vunpack.c.l.b16 %v319
        %v415 = vunpack.c.h.b16 %v319
        %v416 = vunpack.c.l.b16 %v320
        %v417 = vunpack.c.h.b16 %v320
        %v418 = vunpack.c.l.b16 %v321
        %v419 = vunpack.c.h.b16 %v321
        %v420 = vunpack.c.l.b16 %v322
        %v421 = vunpack.c.h.b16 %v322
        %v422 = vunpack.c.l.b16 %v323
        %v423 = vunpack.c.h.b16 %v323
        %v424 = vunpack.c.l.b16 %v324
        %v425 = vunpack.c.h.b16 %v324
        %v426 = vunpack.c.l.b16 %v325
        %v427 = vunpack.c.h.b16 %v325
        %v428 = vunpack.c.l.b16 %v326
        %v429 = vunpack.c.h.b16 %v326
        %v430 = vunpack.c.l.b16 %v327
        %v431 = vunpack.c.h.b16 %v327
        %v432 = vunpack.c.l.b16 %v328
        %v433 = vunpack.c.h.b16 %v328
        %v434 = vunpack.c.l.b16 %v329
        %v435 = vunpack.c.h.b16 %v329
        %v436 = vpack.c.b16 %v376, %v372
        %v437 = vpack.c.b16 %v377, %v373
        %v438 = vpack.c.b16 %v378, %v374
        %v439 = vpack.c.b16 %v379, %v375
        %v440 = vpack.c.b16 %v384, %v380
        %v441 = vpack.c.b16 %v385, %v381
        %v442 = vpack.c.b16 %v386, %v382
        %v443 = vpack.c.b16 %v387, %v383
        %v444 = vpack.c.b16 %v392, %v388
        %v445 = vpack.c.b16 %v393, %v389
        %v446 = vpack.c.b16 %v394, %v390
        %v447 = vpack.c.b16 %v395, %v391
        %v448 = vpack.c.b16 %v400, %v396
        %v449 = vpack.c.b16 %v401, %v397
        %v450 = vpack.c.b16 %v402, %v398
        %v451 = vpack.c.b16 %v403, %v399
        %v452 = vpack.c.b16 %v408, %v404
        %v453 = vpack.c.b16 %v409, %v405
        %v454 = vpack.c.b16 %v410, %v406
        %v455 = vpack.c.b16 %v411, %v407
        %v456 = vpack.c.b16 %v416, %v412
        %v457 = vpack.c.b16 %v417, %v413
        %v458 = vpack.c.b16 %v418, %v414
        %v459 = vpack.c.b16 %v419, %v415
        %v460 = vpack.c.b16 %v424, %v420
        %v461 = vpack.c.b16 %v425, %v421
        %v462 = vpack.c.b16 %v426, %v422
        %v463 = vpack.c.b16 %v427, %v423
        %v464 = vpack.c.b16 %v432, %v428
        %v465 = vpack.c.b16 %v433, %v429
        %v466 = vpack.c.b16 %v434, %v430
        %v467 = vpack.c.b16 %v435, %v431
        %500 = vmatpush.bf16.msra.mxu0 %v464
        %501 = vmatpush.bf16.msra.mxu0 %v460
        %502 = vmatpush.bf16.msra.mxu0 %v456
        %503 = vmatpush.bf16.msra.mxu0 %v452
        %504 = vmatpush.bf16.msra.mxu0 %v448
        %505 = vmatpush.bf16.msra.mxu0 %v444
        %506 = vmatpush.bf16.msra.mxu0 %v440
        %507 = vmatpush.bf16.msra.mxu0 %v436
        %508 = vmatmul.bf16.gmra.mxu0 %v297
        %v509 = vpop.f32.mrf.mxu0
        %v510 = vadd.f32 %v332, %v509
        %v511 = vpop.f32.mrf.mxu0
        %v512 = vadd.f32 %v332, %v511
        %513 = vdwg.mxu0
        %514 = vmatpush.bf16.msra.mxu0 %v465
        %515 = vmatpush.bf16.msra.mxu0 %v461
        %516 = vmatpush.bf16.msra.mxu0 %v457
        %517 = vmatpush.bf16.msra.mxu0 %v453
        %518 = vmatpush.bf16.msra.mxu0 %v449
        %519 = vmatpush.bf16.msra.mxu0 %v445
        %520 = vmatpush.bf16.msra.mxu0 %v441
        %521 = vmatpush.bf16.msra.mxu0 %v437
        %522 = vmatmul.bf16.gmra.mxu0 %v297
        %v523 = vpop.f32.mrf.mxu0
        %v524 = vadd.f32 %v333, %v523
        %v525 = vpop.f32.mrf.mxu0
        %v526 = vadd.f32 %v333, %v525
        %527 = vdwg.mxu0
        %528 = vmatpush.bf16.msra.mxu0 %v466
        %529 = vmatpush.bf16.msra.mxu0 %v462
        %530 = vmatpush.bf16.msra.mxu0 %v458
        %531 = vmatpush.bf16.msra.mxu0 %v454
        %532 = vmatpush.bf16.msra.mxu0 %v450
        %533 = vmatpush.bf16.msra.mxu0 %v446
        %534 = vmatpush.bf16.msra.mxu0 %v442
        %535 = vmatpush.bf16.msra.mxu0 %v438
        %536 = vmatmul.bf16.gmra.mxu0 %v297
        %v537 = vpop.f32.mrf.mxu0
        %v538 = vadd.f32 %v334, %v537
        %v539 = vpop.f32.mrf.mxu0
        %v540 = vadd.f32 %v334, %v539
        %541 = vdwg.mxu0
        %542 = vmatpush.bf16.msra.mxu0 %v467
        %543 = vmatpush.bf16.msra.mxu0 %v463
        %544 = vmatpush.bf16.msra.mxu0 %v459
        %545 = vmatpush.bf16.msra.mxu0 %v455
        %546 = vmatpush.bf16.msra.mxu0 %v451
        %547 = vmatpush.bf16.msra.mxu0 %v447
        %548 = vmatpush.bf16.msra.mxu0 %v443
        %549 = vmatpush.bf16.msra.mxu0 %v439
        %550 = vmatmul.bf16.gmra.mxu0 %v297
        %v551 = vpop.f32.mrf.mxu0
        %v552 = vadd.f32 %v335, %v551
        %v553 = vpop.f32.mrf.mxu0
        %v554 = vadd.f32 %v335, %v553
        %555 = vdwg.mxu0
        %v556 = vmax.f32 %v510, 0.0
        %v557 = vmax.f32 %v524, 0.0
        %v558 = vmax.f32 %v538, 0.0
        %v559 = vmax.f32 %v552, 0.0
        %v560 = vmax.f32 %v512, 0.0
        %v561 = vmax.f32 %v526, 0.0
        %v562 = vmax.f32 %v540, 0.0
        %v563 = vmax.f32 %v554, 0.0
        %v564 = vpack.c.bf16 %v560, %v556
        %v565 = vpack.c.bf16 %v561, %v557
        %v566 = vpack.c.bf16 %v562, %v558
        %v567 = vpack.c.bf16 %v563, %v559
        %v568 = vld [vmem:[#allocation8] sm:$0xf]
        %v569 = vld [vmem:[#allocation8 + $0x4] sm:$0xf]
        %v570 = vld [vmem:[#allocation8 + $0x8] sm:$0xf]
        %v571 = vld [vmem:[#allocation8 + $0xc] sm:$0xf]
        %v572 = vld [vmem:[#allocation8 + $0x10] sm:$0xf]
        %v573 = vld [vmem:[#allocation8 + $0x14] sm:$0xf]
        %v574 = vld [vmem:[#allocation8 + $0x18] sm:$0xf]
        %v575 = vld [vmem:[#allocation8 + $0x1c] sm:$0xf]
        %v576 = vld [vmem:[#allocation8 + $0x20] sm:$0xf]
        %v577 = vld [vmem:[#allocation8 + $0x24] sm:$0xf]
        %v578 = vld [vmem:[#allocation8 + $0x28] sm:$0xf]
        %v579 = vld [vmem:[#allocation8 + $0x2c] sm:$0xf]
        %v580 = vld [vmem:[#allocation8 + $0x30] sm:$0xf]
        %v581 = vld [vmem:[#allocation8 + $0x34] sm:$0xf]
        %v582 = vld [vmem:[#allocation8 + $0x38] sm:$0xf]
        %v583 = vld [vmem:[#allocation8 + $0x3c] sm:$0xf]
        %v584 = vld [vmem:[#allocation8 + $0x40] sm:$0xf]
        %v585 = vld [vmem:[#allocation8 + $0x44] sm:$0xf]
        %v586 = vld [vmem:[#allocation8 + $0x48] sm:$0xf]
        %v587 = vld [vmem:[#allocation8 + $0x4c] sm:$0xf]
        %v588 = vld [vmem:[#allocation8 + $0x50] sm:$0xf]
        %v589 = vld [vmem:[#allocation8 + $0x54] sm:$0xf]
        %v590 = vld [vmem:[#allocation8 + $0x58] sm:$0xf]
        %v591 = vld [vmem:[#allocation8 + $0x5c] sm:$0xf]
        %v592 = vld [vmem:[#allocation8 + $0x60] sm:$0xf]
        %v593 = vld [vmem:[#allocation8 + $0x64] sm:$0xf]
        %v594 = vld [vmem:[#allocation8 + $0x68] sm:$0xf]
        %v595 = vld [vmem:[#allocation8 + $0x6c] sm:$0xf]
        %v596 = vld [vmem:[#allocation8 + $0x70] sm:$0xf]
        %v597 = vld [vmem:[#allocation8 + $0x74] sm:$0xf]
        %v598 = vld [vmem:[#allocation8 + $0x78] sm:$0xf]
        %v599 = vld [vmem:[#allocation8 + $0x7c] sm:$0xf]
        %v600 = vld [vmem:[#allocation8 + $0x80] sm:$0xf]
        %v601 = vld [vmem:[#allocation8 + $0x84] sm:$0xf]
        %v602 = vld [vmem:[#allocation8 + $0x88] sm:$0xf]
        %v603 = vld [vmem:[#allocation8 + $0x8c] sm:$0xf]
        %v604 = vld [vmem:[#allocation8 + $0x90] sm:$0xf]
        %v605 = vld [vmem:[#allocation8 + $0x94] sm:$0xf]
        %v606 = vld [vmem:[#allocation8 + $0x98] sm:$0xf]
        %v607 = vld [vmem:[#allocation8 + $0x9c] sm:$0xf]
        %v608 = vld [vmem:[#allocation8 + $0xa0] sm:$0xf]
        %v609 = vld [vmem:[#allocation8 + $0xa4] sm:$0xf]
        %v610 = vld [vmem:[#allocation8 + $0xa8] sm:$0xf]
        %v611 = vld [vmem:[#allocation8 + $0xac] sm:$0xf]
        %v612 = vld [vmem:[#allocation8 + $0xb0] sm:$0xf]
        %v613 = vld [vmem:[#allocation8 + $0xb4] sm:$0xf]
        %v614 = vld [vmem:[#allocation8 + $0xb8] sm:$0xf]
        %v615 = vld [vmem:[#allocation8 + $0xbc] sm:$0xf]
        %v616 = vld [vmem:[#allocation8 + $0xc0] sm:$0xf]
        %v617 = vld [vmem:[#allocation8 + $0xc4] sm:$0xf]
        %v618 = vld [vmem:[#allocation8 + $0xc8] sm:$0xf]
        %v619 = vld [vmem:[#allocation8 + $0xcc] sm:$0xf]
        %v620 = vld [vmem:[#allocation8 + $0xd0] sm:$0xf]
        %v621 = vld [vmem:[#allocation8 + $0xd4] sm:$0xf]
        %v622 = vld [vmem:[#allocation8 + $0xd8] sm:$0xf]
        %v623 = vld [vmem:[#allocation8 + $0xdc] sm:$0xf]
        %v624 = vld [vmem:[#allocation8 + $0xe0] sm:$0xf]
        %v625 = vld [vmem:[#allocation8 + $0xe4] sm:$0xf]
        %v626 = vld [vmem:[#allocation8 + $0xe8] sm:$0xf]
        %v627 = vld [vmem:[#allocation8 + $0xec] sm:$0xf]
        %v628 = vld [vmem:[#allocation8 + $0xf0] sm:$0xf]
        %v629 = vld [vmem:[#allocation8 + $0xf4] sm:$0xf]
        %v630 = vld [vmem:[#allocation8 + $0xf8] sm:$0xf]
        %v631 = vld [vmem:[#allocation8 + $0xfc] sm:$0xf]
        %v632 = vld [vmem:[%s4] sm:$0x1]
        %v634 = vperm.slane %v632, 0
        %v700 = vunpack.c.l.b16 %v568
        %v701 = vunpack.c.l.b16 %v569
        %v702 = vunpack.c.l.b16 %v570
        %v703 = vunpack.c.l.b16 %v571
        %v704 = vunpack.c.l.b16 %v572
        %v705 = vunpack.c.l.b16 %v573
        %v706 = vunpack.c.l.b16 %v574
        %v707 = vunpack.c.l.b16 %v575
        %v708 = vunpack.c.l.b16 %v576
        %v709 = vunpack.c.l.b16 %v577
        %v710 = vunpack.c.l.b16 %v578
        %v711 = vunpack.c.l.b16 %v579
        %v712 = vunpack.c.l.b16 %v580
        %v713 = vunpack.c.l.b16 %v581
        %v714 = vunpack.c.l.b16 %v582
        %v715 = vunpack.c.l.b16 %v583
        %v716 = vunpack.c.l.b16 %v584
        %v717 = vunpack.c.l.b16 %v585
        %v718 = vunpack.c.l.b16 %v586
        %v719 = vunpack.c.l.b16 %v587
        %v720 = vunpack.c.l.b16 %v588
        %v721 = vunpack.c.l.b16 %v589
        %v722 = vunpack.c.l.b16 %v590
        %v723 = vunpack.c.l.b16 %v591
        %v724 = vunpack.c.l.b16 %v592
        %v725 = vunpack.c.l.b16 %v593
        %v726 = vunpack.c.l.b16 %v594
        %v727 = vunpack.c.l.b16 %v595
        %v728 = vunpack.c.l.b16 %v596
        %v729 = vunpack.c.l.b16 %v597
        %v730 = vunpack.c.l.b16 %v598
        %v731 = vunpack.c.l.b16 %v599
        %v732 = vunpack.c.l.b16 %v600
        %v733 = vunpack.c.l.b16 %v601
        %v734 = vunpack.c.l.b16 %v602
        %v735 = vunpack.c.l.b16 %v603
        %v736 = vunpack.c.l.b16 %v604
        %v737 = vunpack.c.l.b16 %v605
        %v738 = vunpack.c.l.b16 %v606
        %v739 = vunpack.c.l.b16 %v607
        %v740 = vunpack.c.l.b16 %v608
        %v741 = vunpack.c.l.b16 %v609
        %v742 = vunpack.c.l.b16 %v610
        %v743 = vunpack.c.l.b16 %v611
        %v744 = vunpack.c.l.b16 %v612
        %v745 = vunpack.c.l.b16 %v613
        %v746 = vunpack.c.l.b16 %v614
        %v747 = vunpack.c.l.b16 %v615
        %v748 = vunpack.c.l.b16 %v616
        %v749 = vunpack.c.l.b16 %v617
        %v750 = vunpack.c.l.b16 %v618
        %v751 = vunpack.c.l.b16 %v619
        %v752 = vunpack.c.l.b16 %v620
        %v753 = vunpack.c.l.b16 %v621
        %v754 = vunpack.c.l.b16 %v622
        %v755 = vunpack.c.l.b16 %v623
        %v756 = vunpack.c.l.b16 %v624
        %v757 = vunpack.c.l.b16 %v625
        %v758 = vunpack.c.l.b16 %v626
        %v759 = vunpack.c.l.b16 %v627
        %v760 = vunpack.c.l.b16 %v628
        %v761 = vunpack.c.l.b16 %v629
        %v762 = vunpack.c.l.b16 %v630
        %v763 = vunpack.c.l.b16 %v631
        %v764 = vpack.c.b16 %v701, %v700
        %v765 = vpack.c.b16 %v703, %v702
        %v766 = vpack.c.b16 %v705, %v704
        %v767 = vpack.c.b16 %v707, %v706
        %v768 = vpack.c.b16 %v709, %v708
        %v769 = vpack.c.b16 %v711, %v710
        %v770 = vpack.c.b16 %v713, %v712
        %v771 = vpack.c.b16 %v715, %v714
        %v772 = vpack.c.b16 %v717, %v716
        %v773 = vpack.c.b16 %v719, %v718
        %v774 = vpack.c.b16 %v721, %v720
        %v775 = vpack.c.b16 %v723, %v722
        %v776 = vpack.c.b16 %v725, %v724
        %v777 = vpack.c.b16 %v727, %v726
        %v778 = vpack.c.b16 %v729, %v728
        %v779 = vpack.c.b16 %v731, %v730
        %v780 = vpack.c.b16 %v733, %v732
        %v781 = vpack.c.b16 %v735, %v734
        %v782 = vpack.c.b16 %v737, %v736
        %v783 = vpack.c.b16 %v739, %v738
        %v784 = vpack.c.b16 %v741, %v740
        %v785 = vpack.c.b16 %v743, %v742
        %v786 = vpack.c.b16 %v745, %v744
        %v787 = vpack.c.b16 %v747, %v746
        %v788 = vpack.c.b16 %v749, %v748
        %v789 = vpack.c.b16 %v751, %v750
        %v790 = vpack.c.b16 %v753, %v752
        %v791 = vpack.c.b16 %v755, %v754
        %v792 = vpack.c.b16 %v757, %v756
        %v793 = vpack.c.b16 %v759, %v758
        %v794 = vpack.c.b16 %v761, %v760
        %v795 = vpack.c.b16 %v763, %v762
        %828 = vmatpush.bf16.msra.mxu0 %v771
        %829 = vmatpush.bf16.msra.mxu0 %v770
        %830 = vmatpush.bf16.msra.mxu0 %v769
        %831 = vmatpush.bf16.msra.mxu0 %v768
        %832 = vmatpush.bf16.msra.mxu0 %v767
        %833 = vmatpush.bf16.msra.mxu0 %v766
        %834 = vmatpush.bf16.msra.mxu0 %v765
        %835 = vmatpush.bf16.msra.mxu0 %v764
        %836 = vmatmul.bf16.gmra.mxu0 %v564
        %v837 = vpop.f32.mrf.mxu0
        %v838 = vadd.f32 %v634, %v837
        %v839 = vpop.f32.mrf.mxu0
        %v840 = vadd.f32 %v634, %v839
        %841 = vdwg.mxu0
        %842 = vmatpush.bf16.msra.mxu0 %v779
        %843 = vmatpush.bf16.msra.mxu0 %v778
        %844 = vmatpush.bf16.msra.mxu0 %v777
        %845 = vmatpush.bf16.msra.mxu0 %v776
        %846 = vmatpush.bf16.msra.mxu0 %v775
        %847 = vmatpush.bf16.msra.mxu0 %v774
        %848 = vmatpush.bf16.msra.mxu0 %v773
        %849 = vmatpush.bf16.msra.mxu0 %v772
        %850 = vmatmul.bf16.gmra.mxu0 %v565
        %v851 = vpop.f32.mrf.mxu0
        %v852 = vadd.f32 %v838, %v851
        %v853 = vpop.f32.mrf.mxu0
        %v854 = vadd.f32 %v840, %v853
        %855 = vdwg.mxu0
        %856 = vmatpush.bf16.msra.mxu0 %v787
        %857 = vmatpush.bf16.msra.mxu0 %v786
        %858 = vmatpush.bf16.msra.mxu0 %v785
        %859 = vmatpush.bf16.msra.mxu0 %v784
        %860 = vmatpush.bf16.msra.mxu0 %v783
        %861 = vmatpush.bf16.msra.mxu0 %v782
        %862 = vmatpush.bf16.msra.mxu0 %v781
        %863 = vmatpush.bf16.msra.mxu0 %v780
        %864 = vmatmul.bf16.gmra.mxu0 %v566
        %v865 = vpop.f32.mrf.mxu0
        %v866 = vadd.f32 %v852, %v865
        %v867 = vpop.f32.mrf.mxu0
        %v868 = vadd.f32 %v854, %v867
        %869 = vdwg.mxu0
        %870 = vmatpush.bf16.msra.mxu0 %v795
        %871 = vmatpush.bf16.msra.mxu0 %v794
        %872 = vmatpush.bf16.msra.mxu0 %v793
        %873 = vmatpush.bf16.msra.mxu0 %v792
        %874 = vmatpush.bf16.msra.mxu0 %v791
        %875 = vmatpush.bf16.msra.mxu0 %v790
        %876 = vmatpush.bf16.msra.mxu0 %v789
        %877 = vmatpush.bf16.msra.mxu0 %v788
        %878 = vmatmul.bf16.gmra.mxu0 %v567
        %v879 = vpop.f32.mrf.mxu0
        %v880 = vadd.f32 %v866, %v879
        %v881 = vpop.f32.mrf.mxu0
        %v882 = vadd.f32 %v868, %v881
        %883 = vdwg.mxu0
        %884 = vst [vmem:[%s292] sm:$0xff] %v880
        %885 = vst [vmem:[%s292 + $0x8] sm:$0xff] %v882
        %s886 = sand.u32 %s142, 1
        %s887 = scalar_lea.sflag [#allocation4], %s886
        %s888 = sand.u32 %s142, 1
        %s889 = smul.addr %s888, 16
        %s890 = scalar_lea.vmem [#allocation10], %s889
        // Predicated region
        $region57: #{tpu_custom_call.1} parent=39 // pred_check
          %p891 = pneg %p152
        $region58: #{tpu_custom_call.1} parent=39 // pred_check_branch
          %893 = sbr.rel (%p891) target = $region60
        $region59: #{tpu_custom_call.1} parent=39 // pred_region
          %s894 = smul.u32 2, %s24
          %896 = vsyncadd %s887, 0
          %s897 = smul.addr %s894, 8
          %s898 = scalar_lea.hbm %s5, %s897
          %s899 = sshll.u32 %s890, 4
          %s900 = int_to_ptr.vmem [resolvable:$true] %s899
          %s901 = sshll.u32 %s898, 4
          %s902 = int_to_ptr.hbm [resolvable:$true] %s901
          %907 = dma.vmem_to_hbm [thread:$0]  %s900, 256, %s902, %s887, 128, 128, 8
        $region60: #{tpu_custom_call.1} parent=39 // pred_fallthru
          _
      $region40: #{tpu_custom_call.1} parent=5 // pred_fallthru
        _
      %p908 = scmp.le.s32.totalorder 2, %s19
      // Predicated region
      $region61: #{tpu_custom_call.1} parent=5 // pred_check
        %p909 = pneg %p908
      $region62: #{tpu_custom_call.1} parent=5 // pred_check_branch
        %911 = sbr.rel (%p909) target = $region64
      $region63: #{tpu_custom_call.1} parent=5 // pred_region
        %s912 = ssub.s32 %s19, 2
        // Predicated region
        $region65: #{tpu_custom_call.1} parent=63 // pred_check
          %p913 = pneg %p158
        $region66: #{tpu_custom_call.1} parent=63 // pred_check_branch
          %915 = sbr.rel (%p913) target = $region68
        $region67: #{tpu_custom_call.1} parent=63 // pred_region
          %s916 = sand.u32 %s143, 1
          %s917 = scalar_lea.sflag [#allocation4], %s916
          %s918 = sand.u32 %s143, 1
          %s919 = smul.addr %s918, 16
          %s920 = scalar_lea.vmem [#allocation10], %s919
          %922 = dma.done %s917, 256
        $region68: #{tpu_custom_call.1} parent=63 // pred_fallthru
          _
      $region64: #{tpu_custom_call.1} parent=5 // pred_fallthru
        _
    $region6: #{tpu_custom_call.1} parent=1 // loop_footer
      %s23 = sadd.s32 1, %s19
    $region7: #{tpu_custom_call.1} parent=1 // loop_footer_branch
      %18 = sbr.rel target = $region3
    $region8: #{tpu_custom_call.1} parent=1 // loop_exit
      _
    %923 = vsyncpa [#allocation3], 1
    %s924 = scalar_lea.sflag [#allocation3], 1
    %925 = vsyncpa %s924, 1
    %926 = vsyncpa [#allocation6], 1
    %927 = vsyncpa [#allocation9], 1
    %928 = vsyncpa [#allocation4], 1
    %s929 = scalar_lea.sflag [#allocation4], 1
    %930 = vsyncpa %s929, 1

// kernel: tpu_custom_call.1
$region0: #{tpu_custom_call.1}
  #allocation0 [shape = 'u32[]', space=smem, size = 0x4, offset = 0x4, fixed_abs, tag = 'smem constant byte address 0x4 - core index']
  #allocation1 [shape = 'u32[72,128]{1,0:T(1,128)}', space=vmem, size = 0x9000, scoped, tag = 'internal scratch']
  %s0 = inlined_call_operand.hbm [shape: f32[32,128], index: 0, kind: input, shape index: {}]
  %s1 = inlined_call_operand.hbm [shape: bf16[128,512], index: 1, kind: input, shape index: {}]
  %s2 = inlined_call_operand.hbm [shape: f32[1,512], index: 2, kind: input, shape index: {}]
  %s3 = inlined_call_operand.hbm [shape: bf16[512,128], index: 3, kind: input, shape index: {}]
  %s4 = inlined_call_operand.vmem [shape: f32[1,128], index: 4, kind: input, shape index: {}]
  %s5 = inlined_call_operand.hbm [shape: f32[32,128], index: 5, kind: output, shape index: {}]
  %s6 = sld [smem:[#allocation0]]
  $region69: #{tpu_custom_call.1} parent=0
    _
  %s8 = ssub.s32 1, %s6
  %s9 = scalar_select 0, %s8, %s6
  $region1: #{tpu_custom_call.1} parent=0
    #allocation2 [shape = 'u8[16384]{0}', space=vmem, size = 0x4000, scoped, tag = 'input window, operand 0']
    #allocation3 [shape = 's32[2]{0}', space=sflag, size = 0x8, scoped, tag = 'scoped memory for tpu_custom_call.1']
    #allocation4 [shape = 's32[2]{0}', space=sflag, size = 0x8, scoped, tag = 'scoped memory for tpu_custom_call.1']
    #allocation5 [shape = 'u8[131072]{0}', space=vmem, size = 0x20000, scoped, tag = 'input window, operand 1, single buffered']
    #allocation6 [shape = 's32[1]{0}', space=sflag, size = 0x4, scoped, tag = 'scoped memory for tpu_custom_call.1']
    #allocation7 [shape = 'u8[2048]{0}', space=vmem, size = 0x800, scoped, tag = 'input window, operand 2, single buffered']
    #allocation8 [shape = 'u8[131072]{0}', space=vmem, size = 0x20000, scoped, tag = 'input window, operand 3, single buffered']
    #allocation9 [shape = 's32[1]{0}', space=sflag, size = 0x4, scoped, tag = 'scoped memory for tpu_custom_call.1']
    #allocation10 [shape = 'u8[16384]{0}', space=vmem, size = 0x4000, scoped, tag = 'output window, operand 0']
    %10 = vsyncpa [#allocation3], 0
    %s11 = scalar_lea.sflag [#allocation3], 1
    %12 = vsyncpa %s11, 0
    %13 = vsyncpa [#allocation6], 0
    %14 = vsyncpa [#allocation9], 0
    %15 = vsyncpa [#allocation4], 0
    %s16 = scalar_lea.sflag [#allocation4], 1
    %17 = vsyncpa %s16, 0
    loop: start=0, step=1, limit=4
    $region2: #{tpu_custom_call.1} parent=1 // loop_pre_header
      _
    $region3: #{tpu_custom_call.1} parent=1 // loop_header
      %s19 = sphi 0, %s23
      %p20 = scmp.ge.s32.totalorder %s19, 4
      %s29 = sphi 0, %s31
      %s32 = sphi 0, %s29
      %s33 = sphi 0, %s32
      %s49 = sphi 0, %s33
      %s53 = sphi 0, %s53
      %s55 = sphi 0, %s53
      %s56 = sphi 0, %s55
      %s70 = sphi 0, %s56
      %s74 = sphi 0, %s74
      %s76 = sphi 0, %s74
      %s77 = sphi 0, %s76
      %s91 = sphi 0, %s77
      %s95 = sphi 0, %s95
      %s97 = sphi 0, %s95
      %s98 = sphi 0, %s97
      %s112 = sphi 0, %s98
      %s116 = sphi 0, %s116
      %s118 = sphi 0, %s116
      %s119 = sphi 0, %s118
      %s133 = sphi 0, %s119
      %s139 = sphi 0, %s141
      %s142 = sphi 0, %s139
      %s143 = sphi 0, %s142
      %s159 = sphi 0, %s143
    $region4: #{tpu_custom_call.1} parent=1 // loop_header_branch
      %22 = sbr.rel (%p20) target = $region8
    $region5: #{tpu_custom_call.1} parent=1 // loop_body
      %s24 = ssub.s32 %s19, 1
      %s25 = ssub.s32 %s19, 2
      %s26 = sadd.s32 %s19, 1
      %s27 = ssub.s32 %s19, %s26
      %p28 = scmp.eq.s32.totalorder %s27, 0
      %s30 = sadd.s32 %s29, 1
      %s31 = scalar_select %p28, %s29, %s30
      %p34 = pneg %p28
      %p35 = scmp.eq.s32.totalorder %s19, 1
      %p36 = por %p34, %p35
      %p37 = scmp.ne.s32.totalorder %s29, %s32
      %p38 = scmp.eq.s32.totalorder %s19, 0
      %p39 = por %p37, %p38
      %p40 = scmp.ne.s32.totalorder %s29, %s32
      %p41 = scmp.eq.s32.totalorder %s24, 1
      %p42 = por %p40, %p41
      %p43 = scmp.ne.s32.totalorder %s32, %s33
      %p44 = scmp.eq.s32.totalorder %s24, 0
      %p45 = por %p43, %p44
      %p46 = scmp.ne.s32.totalorder %s32, %s33
      %p47 = scmp.eq.s32.totalorder %s25, 1
      %p48 = por %p46, %p47
      %p50 = scmp.ne.s32.totalorder %s33, %s49
      %p51 = scmp.eq.s32.totalorder %s25, 0
      %p52 = por %p50, %p51
      %s54 = sadd.s32 %s53, 1
      %p57 = scmp.eq.s32.totalorder %s19, 1
      %p58 = scmp.ne.s32.totalorder %s53, %s55
      %p59 = scmp.eq.s32.totalorder %s19, 0
      %p60 = por %p58, %p59
      %p61 = scmp.ne.s32.totalorder %s53, %s55
      %p62 = scmp.eq.s32.totalorder %s24, 1
      %p63 = por %p61, %p62
      %p64 = scmp.ne.s32.totalorder %s55, %s56
      %p65 = scmp.eq.s32.totalorder %s24, 0
      %p66 = por %p64, %p65
      %p67 = scmp.ne.s32.totalorder %s55, %s56
      %p68 = scmp.eq.s32.totalorder %s25, 1
      %p69 = por %p67, %p68
      %p71 = scmp.ne.s32.totalorder %s56, %s70
      %p72 = scmp.eq.s32.totalorder %s25, 0
      %p73 = por %p71, %p72
      %s75 = sadd.s32 %s74, 1
      %p78 = scmp.eq.s32.totalorder %s19, 1
      %p79 = scmp.ne.s32.totalorder %s74, %s76
      %p80 = scmp.eq.s32.totalorder %s19, 0
      %p81 = por %p79, %p80
      %p82 = scmp.ne.s32.totalorder %s74, %s76
      %p83 = scmp.eq.s32.totalorder %s24, 1
      %p84 = por %p82, %p83
      %p85 = scmp.ne.s32.totalorder %s76, %s77
      %p86 = scmp.eq.s32.totalorder %s24, 0
      %p87 = por %p85, %p86
      %p88 = scmp.ne.s32.totalorder %s76, %s77
      %p89 = scmp.eq.s32.totalorder %s25, 1
      %p90 = por %p88, %p89
      %p92 = scmp.ne.s32.totalorder %s77, %s91
      %p93 = scmp.eq.s32.totalorder %s25, 0
      %p94 = por %p92, %p93
      %s96 = sadd.s32 %s95, 1
      %p99 = scmp.eq.s32.totalorder %s19, 1
      %p100 = scmp.ne.s32.totalorder %s95, %s97
      %p101 = scmp.eq.s32.totalorder %s19, 0
      %p102 = por %p100, %p101
      %p103 = scmp.ne.s32.totalorder %s95, %s97
      %p104 = scmp.eq.s32.totalorder %s24, 1
      %p105 = por %p103, %p104
      %p106 = scmp.ne.s32.totalorder %s97, %s98
      %p107 = scmp.eq.s32.totalorder %s24, 0
      %p108 = por %p106, %p107
      %p109 = scmp.ne.s32.totalorder %s97, %s98
      %p110 = scmp.eq.s32.totalorder %s25, 1
      %p111 = por %p109, %p110
      %p113 = scmp.ne.s32.totalorder %s98, %s112
      %p114 = scmp.eq.s32.totalorder %s25, 0
      %p115 = por %p113, %p114
      %s117 = sadd.s32 %s116, 1
      %p120 = scmp.eq.s32.totalorder %s19, 1
      %p121 = scmp.ne.s32.totalorder %s116, %s118
      %p122 = scmp.eq.s32.totalorder %s19, 0
      %p123 = por %p121, %p122
      %p124 = scmp.ne.s32.totalorder %s116, %s118
      %p125 = scmp.eq.s32.totalorder %s24, 1
      %p126 = por %p124, %p125
      %p127 = scmp.ne.s32.totalorder %s118, %s119
      %p128 = scmp.eq.s32.totalorder %s24, 0
      %p129 = por %p127, %p128
      %p130 = scmp.ne.s32.totalorder %s118, %s119
      %p131 = scmp.eq.s32.totalorder %s25, 1
      %p132 = por %p130, %p131
      %p134 = scmp.ne.s32.totalorder %s119, %s133
      %p135 = scmp.eq.s32.totalorder %s25, 0
      %p136 = por %p134, %p135
      %s137 = ssub.s32 %s19, %s26
      %p138 = scmp.eq.s32.totalorder %s137, 0
      %s140 = sadd.s32 %s139, 1
      %s141 = scalar_select %p138, %s139, %s140
      %p144 = pneg %p138
      %p145 = scmp.eq.s32.totalorder %s19, 1
      %p146 = por %p144, %p145
      %p147 = scmp.ne.s32.totalorder %s139, %s142
      %p148 = scmp.eq.s32.totalorder %s19, 0
      %p149 = por %p147, %p148
      %p150 = scmp.ne.s32.totalorder %s139, %s142
      %p151 = scmp.eq.s32.totalorder %s24, 1
      %p152 = por %p150, %p151
      %p153 = scmp.ne.s32.totalorder %s142, %s143
      %p154 = scmp.eq.s32.totalorder %s24, 0
      %p155 = por %p153, %p154
      %p156 = scmp.ne.s32.totalorder %s142, %s143
      %p157 = scmp.eq.s32.totalorder %s25, 1
      %p158 = por %p156, %p157
      %p160 = scmp.ne.s32.totalorder %s143, %s159
      %p161 = scmp.eq.s32.totalorder %s25, 0
      %p162 = por %p160, %p161
      %p163 = scmp.le.s32.totalorder 1, %s19
      %p164 = scmp.lt.s32.totalorder %s19, 3
      %p165 = pnand %p163, %p164
      %p166 = pneg %p165
      // Predicated region
      $region9: #{tpu_custom_call.1} parent=5 // pred_check
        _
      $region10: #{tpu_custom_call.1} parent=5 // pred_check_branch
        %168 = sbr.rel (%p165) target = $region12
      $region11: #{tpu_custom_call.1} parent=5 // pred_region
        %s169 = ssub.s32 %s19, 1
        // Predicated region
        $region13: #{tpu_custom_call.1} parent=11 // pred_check
          %p170 = pneg %p66
        $region14: #{tpu_custom_call.1} parent=11 // pred_check_branch
          %172 = sbr.rel (%p170) target = $region16
        $region15: #{tpu_custom_call.1} parent=11 // pred_region
          %174 = vsyncadd [#allocation6], 0
          %s175 = sshll.u32 %s1, 4
          %s176 = int_to_ptr.hbm [resolvable:$true] %s175
          %s177 = sshll.u32 [#allocation5], 4
          %s178 = int_to_ptr.vmem [resolvable:$true] %s177
          %183 = dma.hbm_to_vmem [thread:$0]  %s176, 4096, %s178, [#allocation6], 256, 256, 16
        $region16: #{tpu_custom_call.1} parent=11 // pred_fallthru
          _
        // Predicated region
        $region17: #{tpu_custom_call.1} parent=11 // pred_check
          %p184 = pneg %p87
        $region18: #{tpu_custom_call.1} parent=11 // pred_check_branch
          %186 = sbr.rel (%p184) target = $region20
        $region19: #{tpu_custom_call.1} parent=11 // pred_region
          %188 = vsyncadd [#allocation6], 0
          %s190 = sshll.u32 %s2, 4
          %s191 = int_to_ptr.hbm [resolvable:$true] %s190
          %s192 = sshll.u32 [#allocation7], 4
          %s193 = int_to_ptr.vmem [resolvable:$true] %s192
          %195 = dma.hbm_to_vmem [thread:$0]  %s191, 64, %s193, [#allocation6]
        $region20: #{tpu_custom_call.1} parent=11 // pred_fallthru
          _
        // Predicated region
        $region21: #{tpu_custom_call.1} parent=11 // pred_check
          %p196 = pneg %p108
        $region22: #{tpu_custom_call.1} parent=11 // pred_check_branch
          %198 = sbr.rel (%p196) target = $region24
        $region23: #{tpu_custom_call.1} parent=11 // pred_region
          %200 = vsyncadd [#allocation9], 0
          %s201 = sshll.u32 %s3, 4
          %s202 = int_to_ptr.hbm [resolvable:$true] %s201
          %s203 = sshll.u32 [#allocation8], 4
          %s204 = int_to_ptr.vmem [resolvable:$true] %s203
          %209 = dma.hbm_to_vmem [thread:$0]  %s202, 4096, %s204, [#allocation9], 64, 64, 4
        $region24: #{tpu_custom_call.1} parent=11 // pred_fallthru
          _
        // Predicated region
        $region25: #{tpu_custom_call.1} parent=11 // pred_check
          %p210 = pneg %p129
        $region26: #{tpu_custom_call.1} parent=11 // pred_check_branch
          %212 = sbr.rel (%p210) target = $region28
        $region27: #{tpu_custom_call.1} parent=11 // pred_region
          _
        $region28: #{tpu_custom_call.1} parent=11 // pred_fallthru
          _
      $region12: #{tpu_custom_call.1} parent=5 // pred_fallthru
        _
      %p213 = scmp.lt.s32.totalorder %s19, 2
      // Predicated region
      $region29: #{tpu_custom_call.1} parent=5 // pred_check
        %p214 = pneg %p213
      $region30: #{tpu_custom_call.1} parent=5 // pred_check_branch
        %216 = sbr.rel (%p214) target = $region32
      $region31: #{tpu_custom_call.1} parent=5 // pred_region
        // Predicated region
        $region33: #{tpu_custom_call.1} parent=31 // pred_check
          %p217 = pneg %p39
        $region34: #{tpu_custom_call.1} parent=31 // pred_check_branch
          %219 = sbr.rel (%p217) target = $region36
        $region35: #{tpu_custom_call.1} parent=31 // pred_region
          %s220 = sand.u32 %s29, 1
          %s221 = scalar_lea.sflag [#allocation3], %s220
          %s222 = sand.u32 %s29, 1
          %s223 = smul.addr %s222, 16
          %s224 = scalar_lea.vmem [#allocation2], %s223
          %s225 = smul.u32 2, %s19
          %227 = vsyncadd %s221, 0
          %s228 = smul.addr %s225, 8
          %s229 = scalar_lea.hbm %s0, %s228
          %s230 = sshll.u32 %s229, 4
          %s231 = int_to_ptr.hbm [resolvable:$true] %s230
          %s232 = sshll.u32 %s224, 4
          %s233 = int_to_ptr.vmem [resolvable:$true] %s232
          %238 = dma.hbm_to_vmem [thread:$0]  %s231, 256, %s233, %s221, 128, 128, 8
        $region36: #{tpu_custom_call.1} parent=31 // pred_fallthru
          _
      $region32: #{tpu_custom_call.1} parent=5 // pred_fallthru
        _
      %p239 = scmp.le.s32.totalorder 1, %s19
      %p240 = scmp.lt.s32.totalorder %s19, 3
      %p241 = pnand %p239, %p240
      %p242 = pneg %p241
      // Predicated region
      $region37: #{tpu_custom_call.1} parent=5 // pred_check
        _
      $region38: #{tpu_custom_call.1} parent=5 // pred_check_branch
        %244 = sbr.rel (%p241) target = $region40
      $region39: #{tpu_custom_call.1} parent=5 // pred_region
        %s245 = ssub.s32 %s19, 1
        %s246 = sand.u32 %s32, 1
        %s247 = scalar_lea.sflag [#allocation3], %s246
        %s248 = sand.u32 %s32, 1
        %s249 = smul.addr %s248, 16
        %s250 = scalar_lea.vmem [#allocation2], %s249
        // Predicated region
        $region41: #{tpu_custom_call.1} parent=39 // pred_check
          %p251 = pneg %p45
        $region42: #{tpu_custom_call.1} parent=39 // pred_check_branch
          %253 = sbr.rel (%p251) target = $region44
        $region43: #{tpu_custom_call.1} parent=39 // pred_region
          %255 = dma.done %s247, 256
        $region44: #{tpu_custom_call.1} parent=39 // pred_fallthru
          _
        // Predicated region
        $region45: #{tpu_custom_call.1} parent=39 // pred_check
          %p256 = pneg %p66
        $region46: #{tpu_custom_call.1} parent=39 // pred_check_branch
          %258 = sbr.rel (%p256) target = $region48
        $region47: #{tpu_custom_call.1} parent=39 // pred_region
          %260 = dma.done [#allocation6], 4096
        $region48: #{tpu_custom_call.1} parent=39 // pred_fallthru
          _
        // Predicated region
        $region49: #{tpu_custom_call.1} parent=39 // pred_check
          %p261 = pneg %p87
        $region50: #{tpu_custom_call.1} parent=39 // pred_check_branch
          %263 = sbr.rel (%p261) target = $region52
        $region51: #{tpu_custom_call.1} parent=39 // pred_region
          %265 = dma.done [#allocation6], 64
        $region52: #{tpu_custom_call.1} parent=39 // pred_fallthru
          _
        // Predicated region
        $region53: #{tpu_custom_call.1} parent=39 // pred_check
          %p266 = pneg %p108
        $region54: #{tpu_custom_call.1} parent=39 // pred_check_branch
          %268 = sbr.rel (%p266) target = $region56
        $region55: #{tpu_custom_call.1} parent=39 // pred_region
          %270 = dma.done [#allocation9], 4096
        $region56: #{tpu_custom_call.1} parent=39 // pred_fallthru
          _
        %s271 = sand.u32 %s32, 1
        %s272 = scalar_lea.sflag [#allocation3], %s271
        %s273 = sand.u32 %s32, 1
        %s274 = smul.addr %s273, 16
        %s275 = scalar_lea.vmem [#allocation2], %s274
        %p276 = pneg %p45
        %p277 = pneg %p42
        %p278 = pneg %p66
        %p279 = pneg %p63
        %p280 = pneg %p87
        %p281 = pneg %p84
        %p282 = pneg %p108
        %p283 = pneg %p105
        %p284 = pneg %p129
        %p285 = pneg %p126
        %p286 = pneg %p155
        %p287 = pneg %p152
        %s288 = sand.u32 %s142, 1
        %s289 = scalar_lea.sflag [#allocation4], %s288
        %s290 = sand.u32 %s142, 1
        %s291 = smul.addr %s290, 16
        %s292 = scalar_lea.vmem [#allocation10], %s291
        %s293 = smul.u32 2, %s24
        %s294 = smul.u32 2, %s24
        %v295 = vld [vmem:[%s250] sm:$0xff]
        %v296 = vld [vmem:[%s250 + $0x8] sm:$0xff]
        %v297 = vpack.c.bf16 %v296, %v295
        %v298 = vld [vmem:[#allocation5] sm:$0xff]
        %v299 = vld [vmem:[#allocation5 + $0x8] sm:$0xff]
        %v300 = vld [vmem:[#allocation5 + $0x10] sm:$0xff]
        %v301 = vld [vmem:[#allocation5 + $0x18] sm:$0xff]
        %v302 = vld [vmem:[#allocation5 + $0x20] sm:$0xff]
        %v303 = vld [vmem:[#allocation5 + $0x28] sm:$0xff]
        %v304 = vld [vmem:[#allocation5 + $0x30] sm:$0xff]
        %v305 = vld [vmem:[#allocation5 + $0x38] sm:$0xff]
        %v306 = vld [vmem:[#allocation5 + $0x40] sm:$0xff]
        %v307 = vld [vmem:[#allocation5 + $0x48] sm:$0xff]
        %v308 = vld [vmem:[#allocation5 + $0x50] sm:$0xff]
        %v309 = vld [vmem:[#allocation5 + $0x58] sm:$0xff]
        %v310 = vld [vmem:[#allocation5 + $0x60] sm:$0xff]
        %v311 = vld [vmem:[#allocation5 + $0x68] sm:$0xff]
        %v312 = vld [vmem:[#allocation5 + $0x70] sm:$0xff]
        %v313 = vld [vmem:[#allocation5 + $0x78] sm:$0xff]
        %v314 = vld [vmem:[#allocation5 + $0x80] sm:$0xff]
        %v315 = vld [vmem:[#allocation5 + $0x88] sm:$0xff]
        %v316 = vld [vmem:[#allocation5 + $0x90] sm:$0xff]
        %v317 = vld [vmem:[#allocation5 + $0x98] sm:$0xff]
        %v318 = vld [vmem:[#allocation5 + $0xa0] sm:$0xff]
        %v319 = vld [vmem:[#allocation5 + $0xa8] sm:$0xff]
        %v320 = vld [vmem:[#allocation5 + $0xb0] sm:$0xff]
        %v321 = vld [vmem:[#allocation5 + $0xb8] sm:$0xff]
        %v322 = vld [vmem:[#allocation5 + $0xc0] sm:$0xff]
        %v323 = vld [vmem:[#allocation5 + $0xc8] sm:$0xff]
        %v324 = vld [vmem:[#allocation5 + $0xd0] sm:$0xff]
        %v325 = vld [vmem:[#allocation5 + $0xd8] sm:$0xff]
        %v326 = vld [vmem:[#allocation5 + $0xe0] sm:$0xff]
        %v327 = vld [vmem:[#allocation5 + $0xe8] sm:$0xff]
        %v328 = vld [vmem:[#allocation5 + $0xf0] sm:$0xff]
        %v329 = vld [vmem:[#allocation5 + $0xf8] sm:$0xff]
        %v330 = vld [vmem:[#allocation7] sm:$0xf]
        %v332 = vperm.slane %v330, 0
        %v333 = vperm.slane %v330, 1
        %v334 = vperm.slane %v330, 2
        %v335 = vperm.slane %v330, 3
        %v372 = vunpack.c.l.b16 %v298
        %v373 = vunpack.c.h.b16 %v298
        %v374 = vunpack.c.l.b16 %v299
        %v375 = vunpack.c.h.b16 %v299
        %v376 = vunpack.c.l.b16 %v300
        %v377 = vunpack.c.h.b16 %v300
        %v378 = vunpack.c.l.b16 %v301
        %v379 = vunpack.c.h.b16 %v301
        %v380 = vunpack.c.l.b16 %v302
        %v381 = vunpack.c.h.b16 %v302
        %v382 = vunpack.c.l.b16 %v303
        %v383 = vunpack.c.h.b16 %v303
        %v384 = vunpack.c.l.b16 %v304
        %v385 = vunpack.c.h.b16 %v304
        %v386 = vunpack.c.l.b16 %v305
        %v387 = vunpack.c.h.b16 %v305
        %v388 = vunpack.c.l.b16 %v306
        %v389 = vunpack.c.h.b16 %v306
        %v390 = vunpack.c.l.b16 %v307
        %v391 = vunpack.c.h.b16 %v307
        %v392 = vunpack.c.l.b16 %v308
        %v393 = vunpack.c.h.b16 %v308
        %v394 = vunpack.c.l.b16 %v309
        %v395 = vunpack.c.h.b16 %v309
        %v396 = vunpack.c.l.b16 %v310
        %v397 = vunpack.c.h.b16 %v310
        %v398 = vunpack.c.l.b16 %v311
        %v399 = vunpack.c.h.b16 %v311
        %v400 = vunpack.c.l.b16 %v312
        %v401 = vunpack.c.h.b16 %v312
        %v402 = vunpack.c.l.b16 %v313
        %v403 = vunpack.c.h.b16 %v313
        %v404 = vunpack.c.l.b16 %v314
        %v405 = vunpack.c.h.b16 %v314
        %v406 = vunpack.c.l.b16 %v315
        %v407 = vunpack.c.h.b16 %v315
        %v408 = vunpack.c.l.b16 %v316
        %v409 = vunpack.c.h.b16 %v316
        %v410 = vunpack.c.l.b16 %v317
        %v411 = vunpack.c.h.b16 %v317
        %v412 = vunpack.c.l.b16 %v318
        %v413 = vunpack.c.h.b16 %v318
        %v414 = vunpack.c.l.b16 %v319
        %v415 = vunpack.c.h.b16 %v319
        %v416 = vunpack.c.l.b16 %v320
        %v417 = vunpack.c.h.b16 %v320
        %v418 = vunpack.c.l.b16 %v321
        %v419 = vunpack.c.h.b16 %v321
        %v420 = vunpack.c.l.b16 %v322
        %v421 = vunpack.c.h.b16 %v322
        %v422 = vunpack.c.l.b16 %v323
        %v423 = vunpack.c.h.b16 %v323
        %v424 = vunpack.c.l.b16 %v324
        %v425 = vunpack.c.h.b16 %v324
        %v426 = vunpack.c.l.b16 %v325
        %v427 = vunpack.c.h.b16 %v325
        %v428 = vunpack.c.l.b16 %v326
        %v429 = vunpack.c.h.b16 %v326
        %v430 = vunpack.c.l.b16 %v327
        %v431 = vunpack.c.h.b16 %v327
        %v432 = vunpack.c.l.b16 %v328
        %v433 = vunpack.c.h.b16 %v328
        %v434 = vunpack.c.l.b16 %v329
        %v435 = vunpack.c.h.b16 %v329
        %v436 = vpack.c.b16 %v376, %v372
        %v437 = vpack.c.b16 %v377, %v373
        %v438 = vpack.c.b16 %v378, %v374
        %v439 = vpack.c.b16 %v379, %v375
        %v440 = vpack.c.b16 %v384, %v380
        %v441 = vpack.c.b16 %v385, %v381
        %v442 = vpack.c.b16 %v386, %v382
        %v443 = vpack.c.b16 %v387, %v383
        %v444 = vpack.c.b16 %v392, %v388
        %v445 = vpack.c.b16 %v393, %v389
        %v446 = vpack.c.b16 %v394, %v390
        %v447 = vpack.c.b16 %v395, %v391
        %v448 = vpack.c.b16 %v400, %v396
        %v449 = vpack.c.b16 %v401, %v397
        %v450 = vpack.c.b16 %v402, %v398
        %v451 = vpack.c.b16 %v403, %v399
        %v452 = vpack.c.b16 %v408, %v404
        %v453 = vpack.c.b16 %v409, %v405
        %v454 = vpack.c.b16 %v410, %v406
        %v455 = vpack.c.b16 %v411, %v407
        %v456 = vpack.c.b16 %v416, %v412
        %v457 = vpack.c.b16 %v417, %v413
        %v458 = vpack.c.b16 %v418, %v414
        %v459 = vpack.c.b16 %v419, %v415
        %v460 = vpack.c.b16 %v424, %v420
        %v461 = vpack.c.b16 %v425, %v421
        %v462 = vpack.c.b16 %v426, %v422
        %v463 = vpack.c.b16 %v427, %v423
        %v464 = vpack.c.b16 %v432, %v428
        %v465 = vpack.c.b16 %v433, %v429
        %v466 = vpack.c.b16 %v434, %v430
        %v467 = vpack.c.b16 %v435, %v431
        %500 = vmatpush.bf16.msra.mxu0 %v464
        %501 = vmatpush.bf16.msra.mxu0 %v460
        %502 = vmatpush.bf16.msra.mxu0 %v456
        %503 = vmatpush.bf16.msra.mxu0 %v452
        %504 = vmatpush.bf16.msra.mxu0 %v448
        %505 = vmatpush.bf16.msra.mxu0 %v444
        %506 = vmatpush.bf16.msra.mxu0 %v440
        %507 = vmatpush.bf16.msra.mxu0 %v436
        %508 = vmatmul.bf16.gmra.mxu0 %v297
        %v509 = vpop.f32.mrf.mxu0
        %v510 = vadd.f32 %v332, %v509
        %v511 = vpop.f32.mrf.mxu0
        %v512 = vadd.f32 %v332, %v511
        %513 = vdwg.mxu0
        %514 = vmatpush.bf16.msra.mxu0 %v465
        %515 = vmatpush.bf16.msra.mxu0 %v461
        %516 = vmatpush.bf16.msra.mxu0 %v457
        %517 = vmatpush.bf16.msra.mxu0 %v453
        %518 = vmatpush.bf16.msra.mxu0 %v449
        %519 = vmatpush.bf16.msra.mxu0 %v445
        %520 = vmatpush.bf16.msra.mxu0 %v441
        %521 = vmatpush.bf16.msra.mxu0 %v437
        %522 = vmatmul.bf16.gmra.mxu0 %v297
        %v523 = vpop.f32.mrf.mxu0
        %v524 = vadd.f32 %v333, %v523
        %v525 = vpop.f32.mrf.mxu0
        %v526 = vadd.f32 %v333, %v525
        %527 = vdwg.mxu0
        %528 = vmatpush.bf16.msra.mxu0 %v466
        %529 = vmatpush.bf16.msra.mxu0 %v462
        %530 = vmatpush.bf16.msra.mxu0 %v458
        %531 = vmatpush.bf16.msra.mxu0 %v454
        %532 = vmatpush.bf16.msra.mxu0 %v450
        %533 = vmatpush.bf16.msra.mxu0 %v446
        %534 = vmatpush.bf16.msra.mxu0 %v442
        %535 = vmatpush.bf16.msra.mxu0 %v438
        %536 = vmatmul.bf16.gmra.mxu0 %v297
        %v537 = vpop.f32.mrf.mxu0
        %v538 = vadd.f32 %v334, %v537
        %v539 = vpop.f32.mrf.mxu0
        %v540 = vadd.f32 %v334, %v539
        %541 = vdwg.mxu0
        %542 = vmatpush.bf16.msra.mxu0 %v467
        %543 = vmatpush.bf16.msra.mxu0 %v463
        %544 = vmatpush.bf16.msra.mxu0 %v459
        %545 = vmatpush.bf16.msra.mxu0 %v455
        %546 = vmatpush.bf16.msra.mxu0 %v451
        %547 = vmatpush.bf16.msra.mxu0 %v447
        %548 = vmatpush.bf16.msra.mxu0 %v443
        %549 = vmatpush.bf16.msra.mxu0 %v439
        %550 = vmatmul.bf16.gmra.mxu0 %v297
        %v551 = vpop.f32.mrf.mxu0
        %v552 = vadd.f32 %v335, %v551
        %v553 = vpop.f32.mrf.mxu0
        %v554 = vadd.f32 %v335, %v553
        %555 = vdwg.mxu0
        %v556 = vmax.f32 %v510, 0.0
        %v557 = vmax.f32 %v524, 0.0
        %v558 = vmax.f32 %v538, 0.0
        %v559 = vmax.f32 %v552, 0.0
        %v560 = vmax.f32 %v512, 0.0
        %v561 = vmax.f32 %v526, 0.0
        %v562 = vmax.f32 %v540, 0.0
        %v563 = vmax.f32 %v554, 0.0
        %v564 = vpack.c.bf16 %v560, %v556
        %v565 = vpack.c.bf16 %v561, %v557
        %v566 = vpack.c.bf16 %v562, %v558
        %v567 = vpack.c.bf16 %v563, %v559
        %v568 = vld [vmem:[#allocation8] sm:$0xf]
        %v569 = vld [vmem:[#allocation8 + $0x4] sm:$0xf]
        %v570 = vld [vmem:[#allocation8 + $0x8] sm:$0xf]
        %v571 = vld [vmem:[#allocation8 + $0xc] sm:$0xf]
        %v572 = vld [vmem:[#allocation8 + $0x10] sm:$0xf]
        %v573 = vld [vmem:[#allocation8 + $0x14] sm:$0xf]
        %v574 = vld [vmem:[#allocation8 + $0x18] sm:$0xf]
        %v575 = vld [vmem:[#allocation8 + $0x1c] sm:$0xf]
        %v576 = vld [vmem:[#allocation8 + $0x20] sm:$0xf]
        %v577 = vld [vmem:[#allocation8 + $0x24] sm:$0xf]
        %v578 = vld [vmem:[#allocation8 + $0x28] sm:$0xf]
        %v579 = vld [vmem:[#allocation8 + $0x2c] sm:$0xf]
        %v580 = vld [vmem:[#allocation8 + $0x30] sm:$0xf]
        %v581 = vld [vmem:[#allocation8 + $0x34] sm:$0xf]
        %v582 = vld [vmem:[#allocation8 + $0x38] sm:$0xf]
        %v583 = vld [vmem:[#allocation8 + $0x3c] sm:$0xf]
        %v584 = vld [vmem:[#allocation8 + $0x40] sm:$0xf]
        %v585 = vld [vmem:[#allocation8 + $0x44] sm:$0xf]
        %v586 = vld [vmem:[#allocation8 + $0x48] sm:$0xf]
        %v587 = vld [vmem:[#allocation8 + $0x4c] sm:$0xf]
        %v588 = vld [vmem:[#allocation8 + $0x50] sm:$0xf]
        %v589 = vld [vmem:[#allocation8 + $0x54] sm:$0xf]
        %v590 = vld [vmem:[#allocation8 + $0x58] sm:$0xf]
        %v591 = vld [vmem:[#allocation8 + $0x5c] sm:$0xf]
        %v592 = vld [vmem:[#allocation8 + $0x60] sm:$0xf]
        %v593 = vld [vmem:[#allocation8 + $0x64] sm:$0xf]
        %v594 = vld [vmem:[#allocation8 + $0x68] sm:$0xf]
        %v595 = vld [vmem:[#allocation8 + $0x6c] sm:$0xf]
        %v596 = vld [vmem:[#allocation8 + $0x70] sm:$0xf]
        %v597 = vld [vmem:[#allocation8 + $0x74] sm:$0xf]
        %v598 = vld [vmem:[#allocation8 + $0x78] sm:$0xf]
        %v599 = vld [vmem:[#allocation8 + $0x7c] sm:$0xf]
        %v600 = vld [vmem:[#allocation8 + $0x80] sm:$0xf]
        %v601 = vld [vmem:[#allocation8 + $0x84] sm:$0xf]
        %v602 = vld [vmem:[#allocation8 + $0x88] sm:$0xf]
        %v603 = vld [vmem:[#allocation8 + $0x8c] sm:$0xf]
        %v604 = vld [vmem:[#allocation8 + $0x90] sm:$0xf]
        %v605 = vld [vmem:[#allocation8 + $0x94] sm:$0xf]
        %v606 = vld [vmem:[#allocation8 + $0x98] sm:$0xf]
        %v607 = vld [vmem:[#allocation8 + $0x9c] sm:$0xf]
        %v608 = vld [vmem:[#allocation8 + $0xa0] sm:$0xf]
        %v609 = vld [vmem:[#allocation8 + $0xa4] sm:$0xf]
        %v610 = vld [vmem:[#allocation8 + $0xa8] sm:$0xf]
        %v611 = vld [vmem:[#allocation8 + $0xac] sm:$0xf]
        %v612 = vld [vmem:[#allocation8 + $0xb0] sm:$0xf]
        %v613 = vld [vmem:[#allocation8 + $0xb4] sm:$0xf]
        %v614 = vld [vmem:[#allocation8 + $0xb8] sm:$0xf]
        %v615 = vld [vmem:[#allocation8 + $0xbc] sm:$0xf]
        %v616 = vld [vmem:[#allocation8 + $0xc0] sm:$0xf]
        %v617 = vld [vmem:[#allocation8 + $0xc4] sm:$0xf]
        %v618 = vld [vmem:[#allocation8 + $0xc8] sm:$0xf]
        %v619 = vld [vmem:[#allocation8 + $0xcc] sm:$0xf]
        %v620 = vld [vmem:[#allocation8 + $0xd0] sm:$0xf]
        %v621 = vld [vmem:[#allocation8 + $0xd4] sm:$0xf]
        %v622 = vld [vmem:[#allocation8 + $0xd8] sm:$0xf]
        %v623 = vld [vmem:[#allocation8 + $0xdc] sm:$0xf]
        %v624 = vld [vmem:[#allocation8 + $0xe0] sm:$0xf]
        %v625 = vld [vmem:[#allocation8 + $0xe4] sm:$0xf]
        %v626 = vld [vmem:[#allocation8 + $0xe8] sm:$0xf]
        %v627 = vld [vmem:[#allocation8 + $0xec] sm:$0xf]
        %v628 = vld [vmem:[#allocation8 + $0xf0] sm:$0xf]
        %v629 = vld [vmem:[#allocation8 + $0xf4] sm:$0xf]
        %v630 = vld [vmem:[#allocation8 + $0xf8] sm:$0xf]
        %v631 = vld [vmem:[#allocation8 + $0xfc] sm:$0xf]
        %v632 = vld [vmem:[%s4] sm:$0x1]
        %v634 = vperm.slane %v632, 0
        %v700 = vunpack.c.l.b16 %v568
        %v701 = vunpack.c.l.b16 %v569
        %v702 = vunpack.c.l.b16 %v570
        %v703 = vunpack.c.l.b16 %v571
        %v704 = vunpack.c.l.b16 %v572
        %v705 = vunpack.c.l.b16 %v573
        %v706 = vunpack.c.l.b16 %v574
        %v707 = vunpack.c.l.b16 %v575
        %v708 = vunpack.c.l.b16 %v576
        %v709 = vunpack.c.l.b16 %v577
        %v710 = vunpack.c.l.b16 %v578
        %v711 = vunpack.c.l.b16 %v579
        %v712 = vunpack.c.l.b16 %v580
        %v713 = vunpack.c.l.b16 %v581
        %v714 = vunpack.c.l.b16 %v582
        %v715 = vunpack.c.l.b16 %v583
        %v716 = vunpack.c.l.b16 %v584
        %v717 = vunpack.c.l.b16 %v585
        %v718 = vunpack.c.l.b16 %v586
        %v719 = vunpack.c.l.b16 %v587
        %v720 = vunpack.c.l.b16 %v588
        %v721 = vunpack.c.l.b16 %v589
        %v722 = vunpack.c.l.b16 %v590
        %v723 = vunpack.c.l.b16 %v591
        %v724 = vunpack.c.l.b16 %v592
        %v725 = vunpack.c.l.b16 %v593
        %v726 = vunpack.c.l.b16 %v594
        %v727 = vunpack.c.l.b16 %v595
        %v728 = vunpack.c.l.b16 %v596
        %v729 = vunpack.c.l.b16 %v597
        %v730 = vunpack.c.l.b16 %v598
        %v731 = vunpack.c.l.b16 %v599
        %v732 = vunpack.c.l.b16 %v600
        %v733 = vunpack.c.l.b16 %v601
        %v734 = vunpack.c.l.b16 %v602
        %v735 = vunpack.c.l.b16 %v603
        %v736 = vunpack.c.l.b16 %v604
        %v737 = vunpack.c.l.b16 %v605
        %v738 = vunpack.c.l.b16 %v606
        %v739 = vunpack.c.l.b16 %v607
        %v740 = vunpack.c.l.b16 %v608
        %v741 = vunpack.c.l.b16 %v609
        %v742 = vunpack.c.l.b16 %v610
        %v743 = vunpack.c.l.b16 %v611
        %v744 = vunpack.c.l.b16 %v612
        %v745 = vunpack.c.l.b16 %v613
        %v746 = vunpack.c.l.b16 %v614
        %v747 = vunpack.c.l.b16 %v615
        %v748 = vunpack.c.l.b16 %v616
        %v749 = vunpack.c.l.b16 %v617
        %v750 = vunpack.c.l.b16 %v618
        %v751 = vunpack.c.l.b16 %v619
        %v752 = vunpack.c.l.b16 %v620
        %v753 = vunpack.c.l.b16 %v621
        %v754 = vunpack.c.l.b16 %v622
        %v755 = vunpack.c.l.b16 %v623
        %v756 = vunpack.c.l.b16 %v624
        %v757 = vunpack.c.l.b16 %v625
        %v758 = vunpack.c.l.b16 %v626
        %v759 = vunpack.c.l.b16 %v627
        %v760 = vunpack.c.l.b16 %v628
        %v761 = vunpack.c.l.b16 %v629
        %v762 = vunpack.c.l.b16 %v630
        %v763 = vunpack.c.l.b16 %v631
        %v764 = vpack.c.b16 %v701, %v700
        %v765 = vpack.c.b16 %v703, %v702
        %v766 = vpack.c.b16 %v705, %v704
        %v767 = vpack.c.b16 %v707, %v706
        %v768 = vpack.c.b16 %v709, %v708
        %v769 = vpack.c.b16 %v711, %v710
        %v770 = vpack.c.b16 %v713, %v712
        %v771 = vpack.c.b16 %v715, %v714
        %v772 = vpack.c.b16 %v717, %v716
        %v773 = vpack.c.b16 %v719, %v718
        %v774 = vpack.c.b16 %v721, %v720
        %v775 = vpack.c.b16 %v723, %v722
        %v776 = vpack.c.b16 %v725, %v724
        %v777 = vpack.c.b16 %v727, %v726
        %v778 = vpack.c.b16 %v729, %v728
        %v779 = vpack.c.b16 %v731, %v730
        %v780 = vpack.c.b16 %v733, %v732
        %v781 = vpack.c.b16 %v735, %v734
        %v782 = vpack.c.b16 %v737, %v736
        %v783 = vpack.c.b16 %v739, %v738
        %v784 = vpack.c.b16 %v741, %v740
        %v785 = vpack.c.b16 %v743, %v742
        %v786 = vpack.c.b16 %v745, %v744
        %v787 = vpack.c.b16 %v747, %v746
        %v788 = vpack.c.b16 %v749, %v748
        %v789 = vpack.c.b16 %v751, %v750
        %v790 = vpack.c.b16 %v753, %v752
        %v791 = vpack.c.b16 %v755, %v754
        %v792 = vpack.c.b16 %v757, %v756
        %v793 = vpack.c.b16 %v759, %v758
        %v794 = vpack.c.b16 %v761, %v760
        %v795 = vpack.c.b16 %v763, %v762
        %828 = vmatpush.bf16.msra.mxu0 %v771
        %829 = vmatpush.bf16.msra.mxu0 %v770
        %830 = vmatpush.bf16.msra.mxu0 %v769
        %831 = vmatpush.bf16.msra.mxu0 %v768
        %832 = vmatpush.bf16.msra.mxu0 %v767
        %833 = vmatpush.bf16.msra.mxu0 %v766
        %834 = vmatpush.bf16.msra.mxu0 %v765
        %835 = vmatpush.bf16.msra.mxu0 %v764
        %836 = vmatmul.bf16.gmra.mxu0 %v564
        %v837 = vpop.f32.mrf.mxu0
        %v838 = vadd.f32 %v634, %v837
        %v839 = vpop.f32.mrf.mxu0
        %v840 = vadd.f32 %v634, %v839
        %841 = vdwg.mxu0
        %842 = vmatpush.bf16.msra.mxu0 %v779
        %843 = vmatpush.bf16.msra.mxu0 %v778
        %844 = vmatpush.bf16.msra.mxu0 %v777
        %845 = vmatpush.bf16.msra.mxu0 %v776
        %846 = vmatpush.bf16.msra.mxu0 %v775
        %847 = vmatpush.bf16.msra.mxu0 %v774
        %848 = vmatpush.bf16.msra.mxu0 %v773
        %849 = vmatpush.bf16.msra.mxu0 %v772
        %850 = vmatmul.bf16.gmra.mxu0 %v565
        %v851 = vpop.f32.mrf.mxu0
        %v852 = vadd.f32 %v838, %v851
        %v853 = vpop.f32.mrf.mxu0
        %v854 = vadd.f32 %v840, %v853
        %855 = vdwg.mxu0
        %856 = vmatpush.bf16.msra.mxu0 %v787
        %857 = vmatpush.bf16.msra.mxu0 %v786
        %858 = vmatpush.bf16.msra.mxu0 %v785
        %859 = vmatpush.bf16.msra.mxu0 %v784
        %860 = vmatpush.bf16.msra.mxu0 %v783
        %861 = vmatpush.bf16.msra.mxu0 %v782
        %862 = vmatpush.bf16.msra.mxu0 %v781
        %863 = vmatpush.bf16.msra.mxu0 %v780
        %864 = vmatmul.bf16.gmra.mxu0 %v566
        %v865 = vpop.f32.mrf.mxu0
        %v866 = vadd.f32 %v852, %v865
        %v867 = vpop.f32.mrf.mxu0
        %v868 = vadd.f32 %v854, %v867
        %869 = vdwg.mxu0
        %870 = vmatpush.bf16.msra.mxu0 %v795
        %871 = vmatpush.bf16.msra.mxu0 %v794
        %872 = vmatpush.bf16.msra.mxu0 %v793
        %873 = vmatpush.bf16.msra.mxu0 %v792
        %874 = vmatpush.bf16.msra.mxu0 %v791
        %875 = vmatpush.bf16.msra.mxu0 %v790
        %876 = vmatpush.bf16.msra.mxu0 %v789
        %877 = vmatpush.bf16.msra.mxu0 %v788
        %878 = vmatmul.bf16.gmra.mxu0 %v567
        %v879 = vpop.f32.mrf.mxu0
        %v880 = vadd.f32 %v866, %v879
        %v881 = vpop.f32.mrf.mxu0
        %v882 = vadd.f32 %v868, %v881
        %883 = vdwg.mxu0
        %884 = vst [vmem:[%s292] sm:$0xff] %v880
        %885 = vst [vmem:[%s292 + $0x8] sm:$0xff] %v882
        %s886 = sand.u32 %s142, 1
        %s887 = scalar_lea.sflag [#allocation4], %s886
        %s888 = sand.u32 %s142, 1
        %s889 = smul.addr %s888, 16
        %s890 = scalar_lea.vmem [#allocation10], %s889
        // Predicated region
        $region57: #{tpu_custom_call.1} parent=39 // pred_check
          %p891 = pneg %p152
        $region58: #{tpu_custom_call.1} parent=39 // pred_check_branch
          %893 = sbr.rel (%p891) target = $region60
        $region59: #{tpu_custom_call.1} parent=39 // pred_region
          %s894 = smul.u32 2, %s24
          %896 = vsyncadd %s887, 0
          %s897 = smul.addr %s894, 8
          %s898 = scalar_lea.hbm %s5, %s897
          %s899 = sshll.u32 %s890, 4
          %s900 = int_to_ptr.vmem [resolvable:$true] %s899
          %s901 = sshll.u32 %s898, 4
          %s902 = int_to_ptr.hbm [resolvable:$true] %s901
          %907 = dma.vmem_to_hbm [thread:$0]  %s900, 256, %s902, %s887, 128, 128, 8
        $region60: #{tpu_custom_call.1} parent=39 // pred_fallthru
          _
      $region40: #{tpu_custom_call.1} parent=5 // pred_fallthru
        _
      %p908 = scmp.le.s32.totalorder 2, %s19
      // Predicated region
      $region61: #{tpu_custom_call.1} parent=5 // pred_check
        %p909 = pneg %p908
      $region62: #{tpu_custom_call.1} parent=5 // pred_check_branch
        %911 = sbr.rel (%p909) target = $region64
      $region63: #{tpu_custom_call.1} parent=5 // pred_region
        %s912 = ssub.s32 %s19, 2
        // Predicated region
        $region65: #{tpu_custom_call.1} parent=63 // pred_check
          %p913 = pneg %p158
        $region66: #{tpu_custom_call.1} parent=63 // pred_check_branch
          %915 = sbr.rel (%p913) target = $region68
        $region67: #{tpu_custom_call.1} parent=63 // pred_region
          %s916 = sand.u32 %s143, 1
          %s917 = scalar_lea.sflag [#allocation4], %s916
          %s918 = sand.u32 %s143, 1
          %s919 = smul.addr %s918, 16
          %s920 = scalar_lea.vmem [#allocation10], %s919
          %922 = dma.done %s917, 256
        $region68: #{tpu_custom_call.1} parent=63 // pred_fallthru
          _
      $region64: #{tpu_custom_call.1} parent=5 // pred_fallthru
        _
    $region6: #{tpu_custom_call.1} parent=1 // loop_footer
      %s23 = sadd.s32 1, %s19
    $region7: #{tpu_custom_call.1} parent=1 // loop_footer_branch
      %18 = sbr.rel target = $region3
    $region8: #{tpu_custom_call.1} parent=1 // loop_exit
      _
    %923 = vsyncpa [#allocation3], 1
    %s924 = scalar_lea.sflag [#allocation3], 1
    %925 = vsyncpa %s924, 1
    %926 = vsyncpa [#allocation6], 1
    %927 = vsyncpa [#allocation9], 1
    %928 = vsyncpa [#allocation4], 1
    %s929 = scalar_lea.sflag [#allocation4], 1
    %930 = vsyncpa %s929, 1

</llo_original>
